<compile_context>
chip_gen: v7x
topology: tpu7x:2x2x1
jax: 0.10.0
libtpu: 0.0.40
codegen_flags: <defaults>
</compile_context>

<pallas_src>
import math
import functools

import jax
import jax.numpy as jnp
from jax import lax
from jax.experimental import pallas as pl
from jax.experimental.pallas import tpu as pltpu


# ----------------------------------------------------------------------------
# Pallas kernel
# ----------------------------------------------------------------------------
def _attn_kernel(xq_ref, xkv_ref, cq_ref, sq_ref, ck_ref, sk_ref,
                 wq_ref, wqr_ref, wk_ref, wkr_ref, wv_ref, wp_ref, *rest,
                 num_heads, head_dim, has_mask):
    """One (batch, q_tile) step of Sundial attention + fused projection.

    xq_ref  : (1, TQ, Dm) bf16   query rows of x
    xkv_ref : (1, S,  Dm) bf16   full rows of x (read only when q_tile == 0)
    cq/sq   : (TQ, Dm) f32       RoPE tables, query rows (sign in sin table)
    ck/sk   : (S,  Dm) f32       RoPE tables, key rows
    wq/wqr  : (Dm, Dm) bf16      Q weight / rotate-half-permuted Q weight
                                 (sm_scale folded in)
    wk/wkr  : (Dm, Dm) bf16      K weight / rotate-half-permuted K weight
    wv      : (Dm, Dm) bf16      V weight
    wp      : (Dm, Dm) bf16      folded (Wo . Wfusion_slice) projection
    [mask]  : (1, TQ, S) bf16    optional additive bias
    o_ref   : (1, TQ, Dm)
    kc/vc   : (S, Dm) bf16 VMEM  persistent per-batch K/V cache (post-RoPE)
    """
    if has_mask:
        mask_ref, o_ref, kc_ref, vc_ref = rest
    else:
        o_ref, kc_ref, vc_ref = rest

    q_tile = pl.program_id(1)

    # ---- K/V built once per batch element, cached across q-tiles (P3) ------
    @pl.when(q_tile == 0)
    def _build_kv():
        xkv = xkv_ref[0]                                               # (S, Dm) bf16
        k = jnp.dot(xkv, wk_ref[...], preferred_element_type=jnp.float32)
        kr = jnp.dot(xkv, wkr_ref[...], preferred_element_type=jnp.float32)
        v = jnp.dot(xkv, wv_ref[...], preferred_element_type=jnp.float32)
        # RoPE in f32; the column-permuted weight already did the rotate-half.
        k = k * ck_ref[...] + kr * sk_ref[...]
        kc_ref[...] = k.astype(jnp.bfloat16)
        vc_ref[...] = v.astype(jnp.bfloat16)

    # ---- Q projection + RoPE (sm_scale folded into Wq / Wq_rot in glue) ----
    xq = xq_ref[0]                                                     # (TQ, Dm) bf16
    q = jnp.dot(xq, wq_ref[...], preferred_element_type=jnp.float32)
    qr = jnp.dot(xq, wqr_ref[...], preferred_element_type=jnp.float32)
    q = (q * cq_ref[...] + qr * sq_ref[...]).astype(jnp.bfloat16)      # (TQ, Dm)

    k = kc_ref[...]                                                    # (S, Dm) bf16
    v = vc_ref[...]

    if has_mask:
        bias = mask_ref[0].astype(jnp.float32)                         # (TQ, S)

    # ---- Per-head scores / softmax / P@V (the only Dh-narrow matmuls) ------
    ctx = []
    for h in range(num_heads):
        sl = slice(h * head_dim, (h + 1) * head_dim)
        s = lax.dot_general(q[:, sl], k[:, sl], (((1,), (1,)), ((), ())),
                            preferred_element_type=jnp.float32)        # (TQ, S)
        if has_mask:
            s = s + bias
        s = s - jnp.max(s, axis=-1, keepdims=True)
        p = jnp.exp(s)
        # approx=False per review correctness note; off the MXU critical path.
        p = p * pl.reciprocal(jnp.sum(p, axis=-1, keepdims=True), approx=False)
        # TODO(synk): attention dropout not implemented (dropout_rate == 0 / eval).
        ctx.append(jnp.dot(p.astype(jnp.bfloat16), v[:, sl],
                           preferred_element_type=jnp.float32))        # (TQ, Dh)

    # One wide folded projection matmul (full Dm contraction), write directly.
    ctx = jnp.concatenate(ctx, axis=-1).astype(jnp.bfloat16)           # (TQ, Dm)
    o_ref[0] = jnp.dot(ctx, wp_ref[...],
                       preferred_element_type=jnp.float32).astype(o_ref.dtype)


# ----------------------------------------------------------------------------
# Tile / VMEM policy
# ----------------------------------------------------------------------------
def _vmem_limit_bytes():
    """Generation-aware scoped-VMEM limit (64 MiB parts -> ~40 MiB, else 80)."""
    try:
        cap = pltpu.get_tpu_info().vmem_capacity_bytes
    except Exception:
        cap = 128 * 1024 * 1024
    return int(min(cap * 5 // 8, 80 * 1024 * 1024))


def _choose_q_tile(S, Dm, vmem_limit):
    """Largest q-tile whose residents fit in ~3/4 of the scoped VMEM budget."""
    budget = (3 * vmem_limit) // 4

    def resident_bytes(tq):
        return (2 * tq * Dm * 2        # xq blocks (bf16, double-buffered)
                + 2 * S * Dm * 2       # xkv blocks (bf16)
                + 2 * 2 * tq * Dm * 4  # q-row RoPE tables (f32)
                + 2 * 2 * S * Dm * 4   # full RoPE tables (f32)
                + 2 * 6 * Dm * Dm * 2  # resident weights (bf16)
                + 2 * tq * S * 2       # mask blocks (bf16, worst case)
                + 2 * tq * Dm * 4      # output blocks
                + 2 * S * Dm * 2       # K/V caches (bf16 scratch)
                + 6 * tq * S * 4       # scores / softmax intermediates (f32)
                + 4 * tq * Dm * 4)     # q / ctx intermediates (f32)

    for t in (1024, 512, 256, 128, 64, 32, 16, 8):
        if t <= S and S % t == 0 and resident_bytes(t) <= budget:
            return t
    # TODO(synk): sequences too long for a VMEM-resident KV need a flash
    # (online-softmax) loop over KV tiles; fall back to the smallest legal tile.
    if S % 8 == 0:
        return 8
    return S


# ----------------------------------------------------------------------------
# Wrappers
# ----------------------------------------------------------------------------
def sundial_attention_fused(x, wq, wk, wv, wproj, *, num_heads, rope_theta,
                            mask=None):
    """softmax(RoPE(xWq) RoPE(xWk)^T / sqrt(Dh) [+ mask]) (xWv) @ wproj.

    wq/wk/wv are PyTorch nn.Linear weights ([out, in], no bias).  `wproj` is a
    (Dm, Dm_out) matrix in [in, out] layout; passing wo.T reproduces
    SundialAttention.forward, while MultiScaleAttention passes wo.T @ wf_slice.T
    so each scale emits its fused contribution directly.
    """
    B, S, Dm = x.shape
    H = num_heads
    Dh = Dm // H
    half = Dh // 2
    sm_scale = 1.0 / math.sqrt(Dh)

    # [in, out] layout, bf16 for the MXU; sm_scale folded into the Q weights.
    wq_io = wq.T.astype(jnp.float32) * sm_scale
    wk_io = wk.T.astype(jnp.float32)

    # Per-head rotate-half as a column permutation of the projection weights:
    # rot(x @ W)[:, c] == (x @ W[:, perm])[:, c]  with  perm(h*Dh+j) = h*Dh + (j+half)%Dh
    col = jnp.arange(Dm)
    j = col % Dh
    perm = (col - j) + (j + half) % Dh

    wq_b = wq_io.astype(jnp.bfloat16)
    wqr_b = wq_io[:, perm].astype(jnp.bfloat16)
    wk_b = wk_io.astype(jnp.bfloat16)
    wkr_b = wk_io[:, perm].astype(jnp.bfloat16)
    wv_b = wv.T.astype(jnp.bfloat16)
    wp_b = wproj.astype(jnp.bfloat16)

    # RoPE tables at model width (tiled over heads); rotate-half sign folded
    # into the sin table.  Kept in f32 (VPU math stays f32 on v5e).
    inv_freq = 1.0 / (rope_theta ** (jnp.arange(0, Dh, 2, dtype=jnp.float32) / Dh))
    freqs = jnp.arange(S, dtype=jnp.float32)[:, None] * inv_freq[None, :]   # (S, Dh/2)
    cos_h = jnp.concatenate([jnp.cos(freqs), jnp.cos(freqs)], axis=-1)      # (S, Dh)
    sin_h = jnp.concatenate([-jnp.sin(freqs), jnp.sin(freqs)], axis=-1)     # (S, Dh)
    cos_f = jnp.tile(cos_h, (1, H))                                         # (S, Dm)
    sin_f = jnp.tile(sin_h, (1, H))

    # Pre-cast activations (and mask) to bf16: half the DMA bytes / residency.
    x_bf = x.astype(jnp.bfloat16)

    vmem_limit = _vmem_limit_bytes()
    tq = _choose_q_tile(S, Dm, vmem_limit)
    n_qt = S // tq
    grid = (B, n_qt)

    in_specs = [
        pl.BlockSpec((1, tq, Dm), lambda b, q: (b, q, 0)),   # x (query rows)
        pl.BlockSpec((1, S, Dm), lambda b, q: (b, 0, 0)),    # x (key/value rows)
        pl.BlockSpec((tq, Dm), lambda b, q: (q, 0)),         # cos (query rows)
        pl.BlockSpec((tq, Dm), lambda b, q: (q, 0)),         # sin (query rows)
        pl.BlockSpec((S, Dm), lambda b, q: (0, 0)),          # cos (key rows)
        pl.BlockSpec((S, Dm), lambda b, q: (0, 0)),          # sin (key rows)
        pl.BlockSpec((Dm, Dm), lambda b, q: (0, 0)),         # Wq  (resident)
        pl.BlockSpec((Dm, Dm), lambda b, q: (0, 0)),         # Wq rotate-half perm
        pl.BlockSpec((Dm, Dm), lambda b, q: (0, 0)),         # Wk
        pl.BlockSpec((Dm, Dm), lambda b, q: (0, 0)),         # Wk rotate-half perm
        pl.BlockSpec((Dm, Dm), lambda b, q: (0, 0)),         # Wv
        pl.BlockSpec((Dm, Dm), lambda b, q: (0, 0)),         # folded Wo.Wf
    ]
    args = [x_bf, x_bf, cos_f, sin_f, cos_f, sin_f,
            wq_b, wqr_b, wk_b, wkr_b, wv_b, wp_b]
    if mask is not None:
        in_specs.append(pl.BlockSpec((1, tq, S), lambda b, q: (b, q, 0)))
        args.append(mask.astype(jnp.bfloat16))

    kernel = functools.partial(_attn_kernel, num_heads=H, head_dim=Dh,
                               has_mask=mask is not None)

    # Advisory cost estimate (K/V projections counted once per batch).
    flops = B * (12 * S * Dm * Dm + 4 * S * S * Dm)
    bytes_accessed = (2 * B * S * Dm * 2            # x (xq per-tile + xkv per-batch)
                      + 6 * Dm * Dm * 2             # weights (fetched once)
                      + 4 * S * Dm * 4              # RoPE tables
                      + (B * S * S * 2 if mask is not None else 0)
                      + B * S * Dm * x.dtype.itemsize)
    cost = pl.CostEstimate(flops=int(flops),
                           transcendentals=int(B * H * S * S),
                           bytes_accessed=int(bytes_accessed))

    return pl.pallas_call(
        kernel,
        out_shape=jax.ShapeDtypeStruct((B, S, Dm), x.dtype),
        grid=grid,
        in_specs=in_specs,
        out_specs=pl.BlockSpec((1, tq, Dm), lambda b, q: (b, q, 0)),
        scratch_shapes=[pltpu.VMEM((S, Dm), jnp.bfloat16),   # K cache (post-RoPE)
                        pltpu.VMEM((S, Dm), jnp.bfloat16)],  # V cache
        compiler_params=pltpu.CompilerParams(
            # batch axis parallel (megacore), q-tile axis sequential so the
            # per-batch K/V cache ordering (q_tile == 0 first) holds.
            dimension_semantics=("parallel", "arbitrary"),
            vmem_limit_bytes=vmem_limit),
        cost_estimate=cost,
    )(*args)


def multi_scale_attention(x, ms_params, *, scales, num_heads, rope_theta,
                          attention_mask=None):
    """MultiScaleAttention.forward (o_proj and fusion linear folded per scale)."""
    B, S, Dm = x.shape
    fusion_w = ms_params["fusion_w"]               # (Dm, len(scales)*Dm) [out, in]
    fusion_b = ms_params["fusion_b"]               # (Dm,)

    total = None
    for idx, (sc, p) in enumerate(zip(scales, ms_params["attn"])):
        # Fold o_proj with this scale's slice of the fusion weight (glue, once).
        wf_slice_t = fusion_w[:, idx * Dm:(idx + 1) * Dm].T          # (Dm, Dm) [in,out]
        wproj = p["wo"].T @ wf_slice_t                               # (Dm, Dm)
        if sc == 1:
            contrib = sundial_attention_fused(
                x, p["wq"], p["wk"], p["wv"], wproj,
                num_heads=num_heads, rope_theta=rope_theta, mask=attention_mask)
        else:
            down = x[:, ::sc, :]
            contrib = sundial_attention_fused(
                down, p["wq"], p["wk"], p["wv"], wproj,
                num_heads=num_heads, rope_theta=rope_theta, mask=None)
            contrib = jnp.repeat(contrib, sc, axis=1)                # upsample
            if contrib.shape[1] > S:
                contrib = contrib[:, :S, :]
            elif contrib.shape[1] < S:
                contrib = jnp.pad(
                    contrib, ((0, 0), (0, S - contrib.shape[1]), (0, 0)))
        total = contrib if total is None else total + contrib
    return total + fusion_b.reshape(1, 1, Dm)


# ----------------------------------------------------------------------------
# Pure-JAX reference (mirrors the PyTorch module) for a sanity check
# ----------------------------------------------------------------------------
def _ref_rope(x, theta):  # x: (B, S, H, Dh)
    B, S, H, Dh = x.shape
    inv_freq = 1.0 / (theta ** (jnp.arange(0, Dh, 2, dtype=jnp.float32) / Dh))
    freqs = jnp.arange(S, dtype=jnp.float32)[:, None] * inv_freq[None, :]
    cos = jnp.cos(freqs)[None, :, None, :]
    sin = jnp.sin(freqs)[None, :, None, :]
    x1, x2 = x[..., :Dh // 2], x[..., Dh // 2:]
    return jnp.concatenate([x1 * cos - x2 * sin, x1 * sin + x2 * cos], axis=-1)


def _ref_sundial(x, p, num_heads, theta, mask):
    B, S, Dm = x.shape
    Dh = Dm // num_heads
    q = (x @ p["wq"].T).reshape(B, S, num_heads, Dh)
    k = (x @ p["wk"].T).reshape(B, S, num_heads, Dh)
    v = (x @ p["wv"].T).reshape(B, S, num_heads, Dh)
    q = _ref_rope(q, theta).transpose(0, 2, 1, 3)
    k = _ref_rope(k, theta).transpose(0, 2, 1, 3)
    v = v.transpose(0, 2, 1, 3)
    scores = jnp.einsum("bhqd,bhkd->bhqk", q, k) / math.sqrt(Dh)
    if mask is not None:
        scores = scores + mask[:, None, :, :]
    w = jax.nn.softmax(scores, axis=-1)
    o = jnp.einsum("bhqk,bhkd->bhqd", w, v).transpose(0, 2, 1, 3).reshape(B, S, Dm)
    return o @ p["wo"].T


def _ref_multiscale(x, ms_params, scales, num_heads, theta, mask):
    B, S, Dm = x.shape
    outs = []
    for s, p in zip(scales, ms_params["attn"]):
        if s == 1:
            outs.append(_ref_sundial(x, p, num_heads, theta, mask))
        else:
            up = jnp.repeat(_ref_sundial(x[:, ::s, :], p, num_heads, theta, None),
                            s, axis=1)
            up = up[:, :S, :] if up.shape[1] >= S else jnp.pad(
                up, ((0, 0), (0, S - up.shape[1]), (0, 0)))
            outs.append(up)
    c = jnp.concatenate(outs, axis=-1)
    return c @ ms_params["fusion_w"].T + ms_params["fusion_b"]


# ----------------------------------------------------------------------------
# Main
# ----------------------------------------------------------------------------
if __name__ == "__main__":
    B, S, Dm, H = 2, 16, 32, 4
    scales = [1, 2, 4]
    rope_theta = 10000.0

    key = jax.random.PRNGKey(0)
    keys = jax.random.split(key, 16)

    x = jax.random.normal(keys[0], (B, S, Dm), dtype=jnp.float32)

    # deterministic synthetic parameters (nn.Linear weights are [out, in], no bias)
    def w(k):
        return jax.random.normal(k, (Dm, Dm), dtype=jnp.float32) * 0.05

    attn_params = []
    ki = 1
    for _ in scales:
        attn_params.append({
            "wq": w(keys[ki + 0]),
            "wk": w(keys[ki + 1]),
            "wv": w(keys[ki + 2]),
            "wo": w(keys[ki + 3]),
        })
        ki += 4
    ms_params = {
        "attn": attn_params,
        "fusion_w": jax.random.normal(keys[13], (Dm, len(scales) * Dm),
                                      dtype=jnp.float32) * 0.05,
        "fusion_b": jax.random.normal(keys[14], (Dm,), dtype=jnp.float32) * 0.05,
    }

    # ---- no-mask path (no dense zero mask is materialized) ----
    out = multi_scale_attention(x, ms_params, scales=scales, num_heads=H,
                                rope_theta=rope_theta, attention_mask=None)
    out = jax.block_until_ready(out)
    ref = _ref_multiscale(x, ms_params, scales, H, rope_theta, None)
    assert out.shape == (B, S, Dm)
    assert jnp.allclose(out, ref, rtol=5e-2, atol=5e-2), "mismatch (no mask)"

    # ---- masked path (additive causal mask on the scale-1 branch) ----
    causal = jnp.where(jnp.tril(jnp.ones((S, S), dtype=bool)), 0.0, -1e9)
    mask = jnp.tile(causal[None].astype(jnp.float32), (B, 1, 1))
    out_m = multi_scale_attention(x, ms_params, scales=scales, num_heads=H,
                                  rope_theta=rope_theta, attention_mask=mask)
    out_m = jax.block_until_ready(out_m)
    ref_m = _ref_multiscale(x, ms_params, scales, H, rope_theta, mask)
    assert jnp.allclose(out_m, ref_m, rtol=5e-2, atol=5e-2), "mismatch (mask)"

    print("KERNEL_OK")
</pallas_src>

<mosaic_0001>
module attributes {stable_mosaic.version = 11 : i64} {
  func.func @_attn_kernel(%arg0: i32, %arg1: i32, %arg2: memref<1x16x32xbf16, #tpu.memory_space<vmem>>, %arg3: memref<1x16x32xbf16, #tpu.memory_space<vmem>>, %arg4: memref<16x32xf32, #tpu.memory_space<vmem>>, %arg5: memref<16x32xf32, #tpu.memory_space<vmem>>, %arg6: memref<16x32xf32, #tpu.memory_space<vmem>>, %arg7: memref<16x32xf32, #tpu.memory_space<vmem>>, %arg8: memref<32x32xbf16, #tpu.memory_space<vmem>>, %arg9: memref<32x32xbf16, #tpu.memory_space<vmem>>, %arg10: memref<32x32xbf16, #tpu.memory_space<vmem>>, %arg11: memref<32x32xbf16, #tpu.memory_space<vmem>>, %arg12: memref<32x32xbf16, #tpu.memory_space<vmem>>, %arg13: memref<32x32xbf16, #tpu.memory_space<vmem>>, %arg14: memref<1x16x32xf32, #tpu.memory_space<vmem>>, %arg15: memref<16x32xbf16, #tpu.memory_space<vmem>>, %arg16: memref<16x32xbf16, #tpu.memory_space<vmem>>) attributes {dimension_semantics = [#tpu.dimension_semantics<parallel>, #tpu.dimension_semantics<arbitrary>], iteration_bounds = array<i64: 2, 1>, scalar_prefetch = 0 : i64, scratch_operands = 2 : i64, tpu.core_type = #tpu.core_type<tc>, window_params = [{transform_indices = @transform_0, window_bounds = array<i64: 1, 16, 32>}, {transform_indices = @transform_1, window_bounds = array<i64: 1, 16, 32>}, {transform_indices = @transform_2, window_bounds = array<i64: 16, 32>}, {transform_indices = @transform_3, window_bounds = array<i64: 16, 32>}, {pipeline_mode = #tpu.pipeline_mode<synchronous>, transform_indices = @transform_4, window_bounds = array<i64: 16, 32>}, {pipeline_mode = #tpu.pipeline_mode<synchronous>, transform_indices = @transform_5, window_bounds = array<i64: 16, 32>}, {pipeline_mode = #tpu.pipeline_mode<synchronous>, transform_indices = @transform_6, window_bounds = array<i64: 32, 32>}, {pipeline_mode = #tpu.pipeline_mode<synchronous>, transform_indices = @transform_7, window_bounds = array<i64: 32, 32>}, {pipeline_mode = #tpu.pipeline_mode<synchronous>, transform_indices = @transform_8, window_bounds = array<i64: 32, 32>}, {pipeline_mode = #tpu.pipeline_mode<synchronous>, transform_indices = @transform_9, window_bounds = array<i64: 32, 32>}, {pipeline_mode = #tpu.pipeline_mode<synchronous>, transform_indices = @transform_10, window_bounds = array<i64: 32, 32>}, {pipeline_mode = #tpu.pipeline_mode<synchronous>, transform_indices = @transform_11, window_bounds = array<i64: 32, 32>}, {transform_indices = @transform_12, window_bounds = array<i64: 1, 16, 32>}]} {
    %c0_i32 = arith.constant 0 : i32
    %0 = arith.cmpi eq, %arg1, %c0_i32 : i32
    %1 = arith.extui %0 : i1 to i32
    %c0_i32_0 = arith.constant 0 : i32
    %2 = arith.cmpi ne, %1, %c0_i32_0 : i32
    scf.if %2 {
      %c0_38 = arith.constant 0 : index
      %c0_39 = arith.constant 0 : index
      %c0_40 = arith.constant 0 : index
      %88 = vector.load %arg3[%c0_38, %c0_39, %c0_40] : memref<1x16x32xbf16, #tpu.memory_space<vmem>>, vector<1x16x32xbf16>
      %89 = vector.shape_cast %88 : vector<1x16x32xbf16> to vector<16x32xbf16>
      %c0_41 = arith.constant 0 : index
      %c0_42 = arith.constant 0 : index
      %90 = vector.load %arg10[%c0_41, %c0_42] : memref<32x32xbf16, #tpu.memory_space<vmem>>, vector<32x32xbf16>
      %cst_43 = arith.constant dense<0.000000e+00> : vector<16x32xf32>
      %91 = tpu.matmul %89, %90, %cst_43 {dimension_numbers = #tpu.dot_dimension_numbers<[1], [0], [0], [1], [0, 0, 1, 1], [], []>} : vector<16x32xbf16>, vector<32x32xbf16>, vector<16x32xf32> -> vector<16x32xf32>
      %c0_44 = arith.constant 0 : index
      %c0_45 = arith.constant 0 : index
      %92 = vector.load %arg11[%c0_44, %c0_45] : memref<32x32xbf16, #tpu.memory_space<vmem>>, vector<32x32xbf16>
      %cst_46 = arith.constant dense<0.000000e+00> : vector<16x32xf32>
      %93 = tpu.matmul %89, %92, %cst_46 {dimension_numbers = #tpu.dot_dimension_numbers<[1], [0], [0], [1], [0, 0, 1, 1], [], []>} : vector<16x32xbf16>, vector<32x32xbf16>, vector<16x32xf32> -> vector<16x32xf32>
      %c0_47 = arith.constant 0 : index
      %c0_48 = arith.constant 0 : index
      %94 = vector.load %arg12[%c0_47, %c0_48] : memref<32x32xbf16, #tpu.memory_space<vmem>>, vector<32x32xbf16>
      %cst_49 = arith.constant dense<0.000000e+00> : vector<16x32xf32>
      %95 = tpu.matmul %89, %94, %cst_49 {dimension_numbers = #tpu.dot_dimension_numbers<[1], [0], [0], [1], [0, 0, 1, 1], [], []>} : vector<16x32xbf16>, vector<32x32xbf16>, vector<16x32xf32> -> vector<16x32xf32>
      %c0_50 = arith.constant 0 : index
      %c0_51 = arith.constant 0 : index
      %96 = vector.load %arg6[%c0_50, %c0_51] : memref<16x32xf32, #tpu.memory_space<vmem>>, vector<16x32xf32>
      %97 = arith.mulf %91, %96 : vector<16x32xf32>
      %c0_52 = arith.constant 0 : index
      %c0_53 = arith.constant 0 : index
      %98 = vector.load %arg7[%c0_52, %c0_53] : memref<16x32xf32, #tpu.memory_space<vmem>>, vector<16x32xf32>
      %99 = arith.mulf %93, %98 : vector<16x32xf32>
      %100 = arith.addf %97, %99 : vector<16x32xf32>
      %101 = arith.truncf %100 : vector<16x32xf32> to vector<16x32xbf16>
      %c0_54 = arith.constant 0 : index
      %c0_55 = arith.constant 0 : index
      %102 = vector.load %arg15[%c0_54, %c0_55] : memref<16x32xbf16, #tpu.memory_space<vmem>>, vector<16x32xbf16>
      tpu.vector_store %arg15[%c0_54, %c0_55], %101 {strides = array<i32>} : memref<16x32xbf16, #tpu.memory_space<vmem>>, vector<16x32xbf16>,
      %103 = arith.truncf %95 : vector<16x32xf32> to vector<16x32xbf16>
      %c0_56 = arith.constant 0 : index
      %c0_57 = arith.constant 0 : index
      %104 = vector.load %arg16[%c0_56, %c0_57] : memref<16x32xbf16, #tpu.memory_space<vmem>>, vector<16x32xbf16>
      tpu.vector_store %arg16[%c0_56, %c0_57], %103 {strides = array<i32>} : memref<16x32xbf16, #tpu.memory_space<vmem>>, vector<16x32xbf16>,
    } else {
    }
    %c0 = arith.constant 0 : index
    %c0_1 = arith.constant 0 : index
    %c0_2 = arith.constant 0 : index
    %3 = vector.load %arg2[%c0, %c0_1, %c0_2] : memref<1x16x32xbf16, #tpu.memory_space<vmem>>, vector<1x16x32xbf16>
    %4 = vector.shape_cast %3 : vector<1x16x32xbf16> to vector<16x32xbf16>
    %c0_3 = arith.constant 0 : index
    %c0_4 = arith.constant 0 : index
    %5 = vector.load %arg8[%c0_3, %c0_4] : memref<32x32xbf16, #tpu.memory_space<vmem>>, vector<32x32xbf16>
    %cst = arith.constant dense<0.000000e+00> : vector<16x32xf32>
    %6 = tpu.matmul %4, %5, %cst {dimension_numbers = #tpu.dot_dimension_numbers<[1], [0], [0], [1], [0, 0, 1, 1], [], []>} : vector<16x32xbf16>, vector<32x32xbf16>, vector<16x32xf32> -> vector<16x32xf32>
    %c0_5 = arith.constant 0 : index
    %c0_6 = arith.constant 0 : index
    %7 = vector.load %arg9[%c0_5, %c0_6] : memref<32x32xbf16, #tpu.memory_space<vmem>>, vector<32x32xbf16>
    %cst_7 = arith.constant dense<0.000000e+00> : vector<16x32xf32>
    %8 = tpu.matmul %4, %7, %cst_7 {dimension_numbers = #tpu.dot_dimension_numbers<[1], [0], [0], [1], [0, 0, 1, 1], [], []>} : vector<16x32xbf16>, vector<32x32xbf16>, vector<16x32xf32> -> vector<16x32xf32>
    %c0_8 = arith.constant 0 : index
    %c0_9 = arith.constant 0 : index
    %9 = vector.load %arg4[%c0_8, %c0_9] : memref<16x32xf32, #tpu.memory_space<vmem>>, vector<16x32xf32>
    %10 = arith.mulf %6, %9 : vector<16x32xf32>
    %c0_10 = arith.constant 0 : index
    %c0_11 = arith.constant 0 : index
    %11 = vector.load %arg5[%c0_10, %c0_11] : memref<16x32xf32, #tpu.memory_space<vmem>>, vector<16x32xf32>
    %12 = arith.mulf %8, %11 : vector<16x32xf32>
    %13 = arith.addf %10, %12 : vector<16x32xf32>
    %14 = arith.truncf %13 : vector<16x32xf32> to vector<16x32xbf16>
    %c0_12 = arith.constant 0 : index
    %c0_13 = arith.constant 0 : index
    %15 = vector.load %arg15[%c0_12, %c0_13] : memref<16x32xbf16, #tpu.memory_space<vmem>>, vector<16x32xbf16>
    %c0_14 = arith.constant 0 : index
    %c0_15 = arith.constant 0 : index
    %16 = vector.load %arg16[%c0_14, %c0_15] : memref<16x32xbf16, #tpu.memory_space<vmem>>, vector<16x32xbf16>
    %17 = vector.extract_strided_slice %14 {offsets = [0, 0], sizes = [16, 8], strides = [1, 1]} : vector<16x32xbf16> to vector<16x8xbf16>
    %18 = vector.extract_strided_slice %15 {offsets = [0, 0], sizes = [16, 8], strides = [1, 1]} : vector<16x32xbf16> to vector<16x8xbf16>
    %cst_16 = arith.constant dense<0.000000e+00> : vector<16x16xf32>
    %19 = tpu.matmul %17, %18, %cst_16 {dimension_numbers = #tpu.dot_dimension_numbers<[1], [1], [0], [0], [0, 0, 1, 0], [], []>} : vector<16x8xbf16>, vector<16x8xbf16>, vector<16x16xf32> -> vector<16x16xf32>
    %cst_17 = arith.constant dense<0xFF800000> : vector<16xf32>
    %20 = vector.multi_reduction <maximumf>, %19, %cst_17 [1] : vector<16x16xf32> to vector<16xf32>
    %21 = vector.shape_cast %20 : vector<16xf32> to vector<16x1xf32>
    %22 = vector.broadcast %21 : vector<16x1xf32> to vector<16x16xf32>
    %23 = arith.subf %19, %22 : vector<16x16xf32>
    %24 = math.exp %23 : vector<16x16xf32>
    %cst_18 = arith.constant dense<0.000000e+00> : vector<16xf32>
    %25 = vector.multi_reduction <add>, %24, %cst_18 [1] : vector<16x16xf32> to vector<16xf32>
    %26 = vector.shape_cast %25 : vector<16xf32> to vector<16x1xf32>
    %27 = tpu.reciprocal %26 : vector<16x1xf32> -> vector<16x1xf32>
    %28 = vector.broadcast %27 : vector<16x1xf32> to vector<16x16xf32>
    %29 = arith.mulf %24, %28 : vector<16x16xf32>
    %30 = arith.truncf %29 : vector<16x16xf32> to vector<16x16xbf16>
    %31 = vector.extract_strided_slice %16 {offsets = [0, 0], sizes = [16, 8], strides = [1, 1]} : vector<16x32xbf16> to vector<16x8xbf16>
    %cst_19 = arith.constant dense<0.000000e+00> : vector<16x8xf32>
    %32 = tpu.matmul %30, %31, %cst_19 {dimension_numbers = #tpu.dot_dimension_numbers<[1], [0], [0], [1], [0, 0, 1, 1], [], []>} : vector<16x16xbf16>, vector<16x8xbf16>, vector<16x8xf32> -> vector<16x8xf32>
    %33 = vector.extract_strided_slice %14 {offsets = [0, 8], sizes = [16, 8], strides = [1, 1]} : vector<16x32xbf16> to vector<16x8xbf16>
    %34 = vector.extract_strided_slice %15 {offsets = [0, 8], sizes = [16, 8], strides = [1, 1]} : vector<16x32xbf16> to vector<16x8xbf16>
    %cst_20 = arith.constant dense<0.000000e+00> : vector<16x16xf32>
    %35 = tpu.matmul %33, %34, %cst_20 {dimension_numbers = #tpu.dot_dimension_numbers<[1], [1], [0], [0], [0, 0, 1, 0], [], []>} : vector<16x8xbf16>, vector<16x8xbf16>, vector<16x16xf32> -> vector<16x16xf32>
    %cst_21 = arith.constant dense<0xFF800000> : vector<16xf32>
    %36 = vector.multi_reduction <maximumf>, %35, %cst_21 [1] : vector<16x16xf32> to vector<16xf32>
    %37 = vector.shape_cast %36 : vector<16xf32> to vector<16x1xf32>
    %38 = vector.broadcast %37 : vector<16x1xf32> to vector<16x16xf32>
    %39 = arith.subf %35, %38 : vector<16x16xf32>
    %40 = math.exp %39 : vector<16x16xf32>
    %cst_22 = arith.constant dense<0.000000e+00> : vector<16xf32>
    %41 = vector.multi_reduction <add>, %40, %cst_22 [1] : vector<16x16xf32> to vector<16xf32>
    %42 = vector.shape_cast %41 : vector<16xf32> to vector<16x1xf32>
    %43 = tpu.reciprocal %42 : vector<16x1xf32> -> vector<16x1xf32>
    %44 = vector.broadcast %43 : vector<16x1xf32> to vector<16x16xf32>
    %45 = arith.mulf %40, %44 : vector<16x16xf32>
    %46 = arith.truncf %45 : vector<16x16xf32> to vector<16x16xbf16>
    %47 = vector.extract_strided_slice %16 {offsets = [0, 8], sizes = [16, 8], strides = [1, 1]} : vector<16x32xbf16> to vector<16x8xbf16>
    %cst_23 = arith.constant dense<0.000000e+00> : vector<16x8xf32>
    %48 = tpu.matmul %46, %47, %cst_23 {dimension_numbers = #tpu.dot_dimension_numbers<[1], [0], [0], [1], [0, 0, 1, 1], [], []>} : vector<16x16xbf16>, vector<16x8xbf16>, vector<16x8xf32> -> vector<16x8xf32>
    %49 = vector.extract_strided_slice %14 {offsets = [0, 16], sizes = [16, 8], strides = [1, 1]} : vector<16x32xbf16> to vector<16x8xbf16>
    %50 = vector.extract_strided_slice %15 {offsets = [0, 16], sizes = [16, 8], strides = [1, 1]} : vector<16x32xbf16> to vector<16x8xbf16>
    %cst_24 = arith.constant dense<0.000000e+00> : vector<16x16xf32>
    %51 = tpu.matmul %49, %50, %cst_24 {dimension_numbers = #tpu.dot_dimension_numbers<[1], [1], [0], [0], [0, 0, 1, 0], [], []>} : vector<16x8xbf16>, vector<16x8xbf16>, vector<16x16xf32> -> vector<16x16xf32>
    %cst_25 = arith.constant dense<0xFF800000> : vector<16xf32>
    %52 = vector.multi_reduction <maximumf>, %51, %cst_25 [1] : vector<16x16xf32> to vector<16xf32>
    %53 = vector.shape_cast %52 : vector<16xf32> to vector<16x1xf32>
    %54 = vector.broadcast %53 : vector<16x1xf32> to vector<16x16xf32>
    %55 = arith.subf %51, %54 : vector<16x16xf32>
    %56 = math.exp %55 : vector<16x16xf32>
    %cst_26 = arith.constant dense<0.000000e+00> : vector<16xf32>
    %57 = vector.multi_reduction <add>, %56, %cst_26 [1] : vector<16x16xf32> to vector<16xf32>
    %58 = vector.shape_cast %57 : vector<16xf32> to vector<16x1xf32>
    %59 = tpu.reciprocal %58 : vector<16x1xf32> -> vector<16x1xf32>
    %60 = vector.broadcast %59 : vector<16x1xf32> to vector<16x16xf32>
    %61 = arith.mulf %56, %60 : vector<16x16xf32>
    %62 = arith.truncf %61 : vector<16x16xf32> to vector<16x16xbf16>
    %63 = vector.extract_strided_slice %16 {offsets = [0, 16], sizes = [16, 8], strides = [1, 1]} : vector<16x32xbf16> to vector<16x8xbf16>
    %cst_27 = arith.constant dense<0.000000e+00> : vector<16x8xf32>
    %64 = tpu.matmul %62, %63, %cst_27 {dimension_numbers = #tpu.dot_dimension_numbers<[1], [0], [0], [1], [0, 0, 1, 1], [], []>} : vector<16x16xbf16>, vector<16x8xbf16>, vector<16x8xf32> -> vector<16x8xf32>
    %65 = vector.extract_strided_slice %14 {offsets = [0, 24], sizes = [16, 8], strides = [1, 1]} : vector<16x32xbf16> to vector<16x8xbf16>
    %66 = vector.extract_strided_slice %15 {offsets = [0, 24], sizes = [16, 8], strides = [1, 1]} : vector<16x32xbf16> to vector<16x8xbf16>
    %cst_28 = arith.constant dense<0.000000e+00> : vector<16x16xf32>
    %67 = tpu.matmul %65, %66, %cst_28 {dimension_numbers = #tpu.dot_dimension_numbers<[1], [1], [0], [0], [0, 0, 1, 0], [], []>} : vector<16x8xbf16>, vector<16x8xbf16>, vector<16x16xf32> -> vector<16x16xf32>
    %cst_29 = arith.constant dense<0xFF800000> : vector<16xf32>
    %68 = vector.multi_reduction <maximumf>, %67, %cst_29 [1] : vector<16x16xf32> to vector<16xf32>
    %69 = vector.shape_cast %68 : vector<16xf32> to vector<16x1xf32>
    %70 = vector.broadcast %69 : vector<16x1xf32> to vector<16x16xf32>
    %71 = arith.subf %67, %70 : vector<16x16xf32>
    %72 = math.exp %71 : vector<16x16xf32>
    %cst_30 = arith.constant dense<0.000000e+00> : vector<16xf32>
    %73 = vector.multi_reduction <add>, %72, %cst_30 [1] : vector<16x16xf32> to vector<16xf32>
    %74 = vector.shape_cast %73 : vector<16xf32> to vector<16x1xf32>
    %75 = tpu.reciprocal %74 : vector<16x1xf32> -> vector<16x1xf32>
    %76 = vector.broadcast %75 : vector<16x1xf32> to vector<16x16xf32>
    %77 = arith.mulf %72, %76 : vector<16x16xf32>
    %78 = arith.truncf %77 : vector<16x16xf32> to vector<16x16xbf16>
    %79 = vector.extract_strided_slice %16 {offsets = [0, 24], sizes = [16, 8], strides = [1, 1]} : vector<16x32xbf16> to vector<16x8xbf16>
    %cst_31 = arith.constant dense<0.000000e+00> : vector<16x8xf32>
    %80 = tpu.matmul %78, %79, %cst_31 {dimension_numbers = #tpu.dot_dimension_numbers<[1], [0], [0], [1], [0, 0, 1, 1], [], []>} : vector<16x16xbf16>, vector<16x8xbf16>, vector<16x8xf32> -> vector<16x8xf32>
    %81 = tpu.concatenate %32, %48, %64, %80 in 1 : vector<16x8xf32>, vector<16x8xf32>, vector<16x8xf32>, vector<16x8xf32> -> vector<16x32xf32>
    %82 = arith.truncf %81 : vector<16x32xf32> to vector<16x32xbf16>
    %c0_32 = arith.constant 0 : index
    %c0_33 = arith.constant 0 : index
    %83 = vector.load %arg13[%c0_32, %c0_33] : memref<32x32xbf16, #tpu.memory_space<vmem>>, vector<32x32xbf16>
    %cst_34 = arith.constant dense<0.000000e+00> : vector<16x32xf32>
    %84 = tpu.matmul %82, %83, %cst_34 {dimension_numbers = #tpu.dot_dimension_numbers<[1], [0], [0], [1], [0, 0, 1, 1], [], []>} : vector<16x32xbf16>, vector<32x32xbf16>, vector<16x32xf32> -> vector<16x32xf32>
    %c0_35 = arith.constant 0 : index
    %c0_36 = arith.constant 0 : index
    %c0_37 = arith.constant 0 : index
    %85 = vector.load %arg14[%c0_35, %c0_36, %c0_37] : memref<1x16x32xf32, #tpu.memory_space<vmem>>, vector<1x16x32xf32>
    %86 = vector.shape_cast %85 : vector<1x16x32xf32> to vector<16x32xf32>
    %87 = vector.shape_cast %84 : vector<16x32xf32> to vector<1x16x32xf32>
    tpu.vector_store %arg14[%c0_35, %c0_36, %c0_37], %87 {strides = array<i32>} : memref<1x16x32xf32, #tpu.memory_space<vmem>>, vector<1x16x32xf32>,
    return
  }
  func.func @transform_0(%arg0: i32, %arg1: i32) -> (i32, i32, i32) {
    %c0_i32 = arith.constant 0 : i32
    %c0_i32_0 = arith.constant 0 : i32
    return %arg0, %arg1, %c0_i32 : i32, i32, i32
  }
  func.func @transform_1(%arg0: i32, %arg1: i32) -> (i32, i32, i32) {
    %c0_i32 = arith.constant 0 : i32
    %c0_i32_0 = arith.constant 0 : i32
    %c0_i32_1 = arith.constant 0 : i32
    return %arg0, %c0_i32, %c0_i32_0 : i32, i32, i32
  }
  func.func @transform_2(%arg0: i32, %arg1: i32) -> (i32, i32) {
    %c0_i32 = arith.constant 0 : i32
    %c0_i32_0 = arith.constant 0 : i32
    return %arg1, %c0_i32 : i32, i32
  }
  func.func @transform_3(%arg0: i32, %arg1: i32) -> (i32, i32) {
    %c0_i32 = arith.constant 0 : i32
    %c0_i32_0 = arith.constant 0 : i32
    return %arg1, %c0_i32 : i32, i32
  }
  func.func @transform_4(%arg0: i32, %arg1: i32) -> (i32, i32) {
    %c0_i32 = arith.constant 0 : i32
    %c0_i32_0 = arith.constant 0 : i32
    %c0_i32_1 = arith.constant 0 : i32
    return %c0_i32, %c0_i32_0 : i32, i32
  }
  func.func @transform_5(%arg0: i32, %arg1: i32) -> (i32, i32) {
    %c0_i32 = arith.constant 0 : i32
    %c0_i32_0 = arith.constant 0 : i32
    %c0_i32_1 = arith.constant 0 : i32
    return %c0_i32, %c0_i32_0 : i32, i32
  }
  func.func @transform_6(%arg0: i32, %arg1: i32) -> (i32, i32) {
    %c0_i32 = arith.constant 0 : i32
    %c0_i32_0 = arith.constant 0 : i32
    %c0_i32_1 = arith.constant 0 : i32
    return %c0_i32, %c0_i32_0 : i32, i32
  }
  func.func @transform_7(%arg0: i32, %arg1: i32) -> (i32, i32) {
    %c0_i32 = arith.constant 0 : i32
    %c0_i32_0 = arith.constant 0 : i32
    %c0_i32_1 = arith.constant 0 : i32
    return %c0_i32, %c0_i32_0 : i32, i32
  }
  func.func @transform_8(%arg0: i32, %arg1: i32) -> (i32, i32) {
    %c0_i32 = arith.constant 0 : i32
    %c0_i32_0 = arith.constant 0 : i32
    %c0_i32_1 = arith.constant 0 : i32
    return %c0_i32, %c0_i32_0 : i32, i32
  }
  func.func @transform_9(%arg0: i32, %arg1: i32) -> (i32, i32) {
    %c0_i32 = arith.constant 0 : i32
    %c0_i32_0 = arith.constant 0 : i32
    %c0_i32_1 = arith.constant 0 : i32
    return %c0_i32, %c0_i32_0 : i32, i32
  }
  func.func @transform_10(%arg0: i32, %arg1: i32) -> (i32, i32) {
    %c0_i32 = arith.constant 0 : i32
    %c0_i32_0 = arith.constant 0 : i32
    %c0_i32_1 = arith.constant 0 : i32
    return %c0_i32, %c0_i32_0 : i32, i32
  }
  func.func @transform_11(%arg0: i32, %arg1: i32) -> (i32, i32) {
    %c0_i32 = arith.constant 0 : i32
    %c0_i32_0 = arith.constant 0 : i32
    %c0_i32_1 = arith.constant 0 : i32
    return %c0_i32, %c0_i32_0 : i32, i32
  }
  func.func @transform_12(%arg0: i32, %arg1: i32) -> (i32, i32, i32) {
    %c0_i32 = arith.constant 0 : i32
    %c0_i32_0 = arith.constant 0 : i32
    return %arg0, %arg1, %c0_i32 : i32, i32, i32
  }
}

</mosaic_0001>

<llo_original>
// kernel: tpu_custom_call.1
$region0: #{tpu_custom_call.1}
  #allocation0 [shape = 'u32[]', space=smem, size = 0x4, offset = 0x4, fixed_abs, tag = 'smem constant byte address 0x4 - core index']
  #allocation1 [shape = 'u32[144,128]{1,0:T(1,128)}', space=vmem, size = 0x12000, scoped, tag = 'internal scratch']
  #allocation2 [shape = 'bf16[16,32]{1,0:T(16,128)(2,1)}', space=vmem, size = 0x1000, scoped, tag = 'scratch operand']
  #allocation3 [shape = 'bf16[16,32]{1,0:T(16,128)(2,1)}', space=vmem, size = 0x1000, scoped, tag = 'scratch operand']
  %s0 = inlined_call_operand.hbm [shape: bf16[2,16,32], index: 0, kind: input, shape index: {}]
  %s1 = inlined_call_operand.hbm [shape: bf16[2,16,32], index: 1, kind: input, shape index: {}]
  %s2 = inlined_call_operand.hbm [shape: f32[16,32], index: 2, kind: input, shape index: {}]
  %s3 = inlined_call_operand.hbm [shape: f32[16,32], index: 3, kind: input, shape index: {}]
  %s4 = inlined_call_operand.hbm [shape: f32[16,32], index: 4, kind: input, shape index: {}]
  %s5 = inlined_call_operand.hbm [shape: f32[16,32], index: 5, kind: input, shape index: {}]
  %s6 = inlined_call_operand.hbm [shape: bf16[32,32], index: 6, kind: input, shape index: {}]
  %s7 = inlined_call_operand.hbm [shape: bf16[32,32], index: 7, kind: input, shape index: {}]
  %s8 = inlined_call_operand.hbm [shape: bf16[32,32], index: 8, kind: input, shape index: {}]
  %s9 = inlined_call_operand.hbm [shape: bf16[32,32], index: 9, kind: input, shape index: {}]
  %s10 = inlined_call_operand.hbm [shape: bf16[32,32], index: 10, kind: input, shape index: {}]
  %s11 = inlined_call_operand.hbm [shape: bf16[32,32], index: 11, kind: input, shape index: {}]
  %s12 = inlined_call_operand.hbm [shape: f32[2,16,32], index: 12, kind: output, shape index: {}]
  %s13 = sld [smem:[#allocation0]]
  $region133: #{tpu_custom_call.1} parent=0
    _
  %s15 = ssub.s32 1, %s13
  %s16 = scalar_select 0, %s15, %s13
  $region1: #{tpu_custom_call.1} parent=0
    #allocation4 [shape = 'u8[8192]{0}', space=vmem, size = 0x2000, scoped, tag = 'input window, operand 0']
    #allocation5 [shape = 's32[2]{0}', space=sflag, size = 0x8, scoped, tag = 'scoped memory for tpu_custom_call.1']
    #allocation6 [shape = 's32[2]{0}', space=sflag, size = 0x8, scoped, tag = 'scoped memory for tpu_custom_call.1']
    #allocation7 [shape = 'u8[8192]{0}', space=vmem, size = 0x2000, scoped, tag = 'input window, operand 1']
    #allocation8 [shape = 's32[2]{0}', space=sflag, size = 0x8, scoped, tag = 'scoped memory for tpu_custom_call.1']
    #allocation9 [shape = 'u8[8192]{0}', space=vmem, size = 0x2000, scoped, tag = 'input window, operand 2, single buffered']
    #allocation10 [shape = 'u8[8192]{0}', space=vmem, size = 0x2000, scoped, tag = 'input window, operand 3, single buffered']
    #allocation11 [shape = 's32[1]{0}', space=sflag, size = 0x4, scoped, tag = 'scoped memory for tpu_custom_call.1']
    #allocation12 [shape = 'u8[8192]{0}', space=vmem, size = 0x2000, scoped, tag = 'input window, operand 4, single buffered']
    #allocation13 [shape = 'u8[8192]{0}', space=vmem, size = 0x2000, scoped, tag = 'input window, operand 5, single buffered']
    #allocation14 [shape = 's32[1]{0}', space=sflag, size = 0x4, scoped, tag = 'scoped memory for tpu_custom_call.1']
    #allocation15 [shape = 'u8[8192]{0}', space=vmem, size = 0x2000, scoped, tag = 'input window, operand 6, single buffered']
    #allocation16 [shape = 'u8[8192]{0}', space=vmem, size = 0x2000, scoped, tag = 'input window, operand 7, single buffered']
    #allocation17 [shape = 's32[1]{0}', space=sflag, size = 0x4, scoped, tag = 'scoped memory for tpu_custom_call.1']
    #allocation18 [shape = 'u8[8192]{0}', space=vmem, size = 0x2000, scoped, tag = 'input window, operand 8, single buffered']
    #allocation19 [shape = 'u8[8192]{0}', space=vmem, size = 0x2000, scoped, tag = 'input window, operand 9, single buffered']
    #allocation20 [shape = 's32[1]{0}', space=sflag, size = 0x4, scoped, tag = 'scoped memory for tpu_custom_call.1']
    #allocation21 [shape = 'u8[8192]{0}', space=vmem, size = 0x2000, scoped, tag = 'input window, operand 10, single buffered']
    #allocation22 [shape = 'u8[8192]{0}', space=vmem, size = 0x2000, scoped, tag = 'input window, operand 11, single buffered']
    #allocation23 [shape = 's32[1]{0}', space=sflag, size = 0x4, scoped, tag = 'scoped memory for tpu_custom_call.1']
    #allocation24 [shape = 'u8[16384]{0}', space=vmem, size = 0x4000, scoped, tag = 'output window, operand 0']
    %17 = vsyncpa [#allocation5], 0
    %s18 = scalar_lea.sflag [#allocation5], 1
    %19 = vsyncpa %s18, 0
    %20 = vsyncpa [#allocation8], 0
    %s21 = scalar_lea.sflag [#allocation8], 1
    %22 = vsyncpa %s21, 0
    %23 = vsyncpa [#allocation11], 0
    %24 = vsyncpa [#allocation14], 0
    %25 = vsyncpa [#allocation17], 0
    %26 = vsyncpa [#allocation20], 0
    %27 = vsyncpa [#allocation23], 0
    %28 = vsyncpa [#allocation6], 0
    %s29 = scalar_lea.sflag [#allocation6], 1
    %30 = vsyncpa %s29, 0
    loop: start=0, step=1, limit=4
    $region2: #{tpu_custom_call.1} parent=1 // loop_pre_header
      _
    $region3: #{tpu_custom_call.1} parent=1 // loop_header
      %s32 = sphi 0, %s36
      %p33 = scmp.ge.s32.totalorder %s32, 4
      %s39 = sphi 0, %s51
      %s40 = sphi 0, %s47
      %s41 = sphi 0, %s39
      %s42 = sphi 0, %s40
      %s43 = sphi 0, %s41
      %s44 = sphi 0, %s42
      %s56 = sphi 0, %s58
      %s59 = sphi 0, %s56
      %s60 = sphi 0, %s59
      %s76 = sphi 0, %s60
      %s82 = sphi 0, %s84
      %s85 = sphi 0, %s82
      %s86 = sphi 0, %s85
      %s102 = sphi 0, %s86
      %s108 = sphi 0, %s110
      %s111 = sphi 0, %s108
      %s112 = sphi 0, %s111
      %s128 = sphi 0, %s112
      %s134 = sphi 0, %s136
      %s137 = sphi 0, %s134
      %s138 = sphi 0, %s137
      %s154 = sphi 0, %s138
      %s158 = sphi 0, %s158
      %s160 = sphi 0, %s158
      %s161 = sphi 0, %s160
      %s175 = sphi 0, %s161
      %s179 = sphi 0, %s179
      %s181 = sphi 0, %s179
      %s182 = sphi 0, %s181
      %s196 = sphi 0, %s182
      %s200 = sphi 0, %s200
      %s202 = sphi 0, %s200
      %s203 = sphi 0, %s202
      %s217 = sphi 0, %s203
      %s221 = sphi 0, %s221
      %s223 = sphi 0, %s221
      %s224 = sphi 0, %s223
      %s238 = sphi 0, %s224
      %s242 = sphi 0, %s242
      %s244 = sphi 0, %s242
      %s245 = sphi 0, %s244
      %s259 = sphi 0, %s245
      %s263 = sphi 0, %s263
      %s265 = sphi 0, %s263
      %s266 = sphi 0, %s265
      %s280 = sphi 0, %s266
      %s284 = sphi 0, %s284
      %s286 = sphi 0, %s284
      %s287 = sphi 0, %s286
      %s301 = sphi 0, %s287
      %s305 = sphi 0, %s305
      %s307 = sphi 0, %s305
      %s308 = sphi 0, %s307
      %s322 = sphi 0, %s308
      %s330 = sphi 0, %s332
      %s333 = sphi 0, %s330
      %s334 = sphi 0, %s333
      %s350 = sphi 0, %s334
    $region4: #{tpu_custom_call.1} parent=1 // loop_header_branch
      %35 = sbr.rel (%p33) target = $region8
    $region5: #{tpu_custom_call.1} parent=1 // loop_body
      %s37 = ssub.s32 %s32, 1
      %s38 = ssub.s32 %s32, 2
      %s45 = sadd.s32 1, %s40
      %p46 = scmp.ge.s32.totalorder %s45, 1
      %s47 = scalar_select %p46, 0, %s45
      %s48 = sadd.s32 1, %s39
      %s49 = scalar_select %p46, %s48, %s39
      %p50 = scmp.ge.s32.totalorder %s49, 2
      %s51 = scalar_select %p50, 0, %s49
      %s52 = ssub.s32 %s39, %s51
      %s53 = ssub.s32 %s40, %s47
      %s54 = sor.u32 %s52, %s53
      %p55 = scmp.eq.s32.totalorder %s54, 0
      %s57 = sadd.s32 %s56, 1
      %s58 = scalar_select %p55, %s56, %s57
      %p61 = pneg %p55
      %p62 = scmp.eq.s32.totalorder %s32, 1
      %p63 = por %p61, %p62
      %p64 = scmp.ne.s32.totalorder %s56, %s59
      %p65 = scmp.eq.s32.totalorder %s32, 0
      %p66 = por %p64, %p65
      %p67 = scmp.ne.s32.totalorder %s56, %s59
      %p68 = scmp.eq.s32.totalorder %s37, 1
      %p69 = por %p67, %p68
      %p70 = scmp.ne.s32.totalorder %s59, %s60
      %p71 = scmp.eq.s32.totalorder %s37, 0
      %p72 = por %p70, %p71
      %p73 = scmp.ne.s32.totalorder %s59, %s60
      %p74 = scmp.eq.s32.totalorder %s38, 1
      %p75 = por %p73, %p74
      %p77 = scmp.ne.s32.totalorder %s60, %s76
      %p78 = scmp.eq.s32.totalorder %s38, 0
      %p79 = por %p77, %p78
      %s80 = ssub.s32 %s39, %s51
      %p81 = scmp.eq.s32.totalorder %s80, 0
      %s83 = sadd.s32 %s82, 1
      %s84 = scalar_select %p81, %s82, %s83
      %p87 = pneg %p81
      %p88 = scmp.eq.s32.totalorder %s32, 1
      %p89 = por %p87, %p88
      %p90 = scmp.ne.s32.totalorder %s82, %s85
      %p91 = scmp.eq.s32.totalorder %s32, 0
      %p92 = por %p90, %p91
      %p93 = scmp.ne.s32.totalorder %s82, %s85
      %p94 = scmp.eq.s32.totalorder %s37, 1
      %p95 = por %p93, %p94
      %p96 = scmp.ne.s32.totalorder %s85, %s86
      %p97 = scmp.eq.s32.totalorder %s37, 0
      %p98 = por %p96, %p97
      %p99 = scmp.ne.s32.totalorder %s85, %s86
      %p100 = scmp.eq.s32.totalorder %s38, 1
      %p101 = por %p99, %p100
      %p103 = scmp.ne.s32.totalorder %s86, %s102
      %p104 = scmp.eq.s32.totalorder %s38, 0
      %p105 = por %p103, %p104
      %s106 = ssub.s32 %s40, %s47
      %p107 = scmp.eq.s32.totalorder %s106, 0
      %s109 = sadd.s32 %s108, 1
      %s110 = scalar_select %p107, %s108, %s109
      %p113 = pneg %p107
      %p114 = scmp.eq.s32.totalorder %s32, 1
      %p115 = por %p113, %p114
      %p116 = scmp.ne.s32.totalorder %s108, %s111
      %p117 = scmp.eq.s32.totalorder %s32, 0
      %p118 = por %p116, %p117
      %p119 = scmp.ne.s32.totalorder %s108, %s111
      %p120 = scmp.eq.s32.totalorder %s37, 1
      %p121 = por %p119, %p120
      %p122 = scmp.ne.s32.totalorder %s111, %s112
      %p123 = scmp.eq.s32.totalorder %s37, 0
      %p124 = por %p122, %p123
      %p125 = scmp.ne.s32.totalorder %s111, %s112
      %p126 = scmp.eq.s32.totalorder %s38, 1
      %p127 = por %p125, %p126
      %p129 = scmp.ne.s32.totalorder %s112, %s128
      %p130 = scmp.eq.s32.totalorder %s38, 0
      %p131 = por %p129, %p130
      %s132 = ssub.s32 %s40, %s47
      %p133 = scmp.eq.s32.totalorder %s132, 0
      %s135 = sadd.s32 %s134, 1
      %s136 = scalar_select %p133, %s134, %s135
      %p139 = pneg %p133
      %p140 = scmp.eq.s32.totalorder %s32, 1
      %p141 = por %p139, %p140
      %p142 = scmp.ne.s32.totalorder %s134, %s137
      %p143 = scmp.eq.s32.totalorder %s32, 0
      %p144 = por %p142, %p143
      %p145 = scmp.ne.s32.totalorder %s134, %s137
      %p146 = scmp.eq.s32.totalorder %s37, 1
      %p147 = por %p145, %p146
      %p148 = scmp.ne.s32.totalorder %s137, %s138
      %p149 = scmp.eq.s32.totalorder %s37, 0
      %p150 = por %p148, %p149
      %p151 = scmp.ne.s32.totalorder %s137, %s138
      %p152 = scmp.eq.s32.totalorder %s38, 1
      %p153 = por %p151, %p152
      %p155 = scmp.ne.s32.totalorder %s138, %s154
      %p156 = scmp.eq.s32.totalorder %s38, 0
      %p157 = por %p155, %p156
      %s159 = sadd.s32 %s158, 1
      %p162 = scmp.eq.s32.totalorder %s32, 1
      %p163 = scmp.ne.s32.totalorder %s158, %s160
      %p164 = scmp.eq.s32.totalorder %s32, 0
      %p165 = por %p163, %p164
      %p166 = scmp.ne.s32.totalorder %s158, %s160
      %p167 = scmp.eq.s32.totalorder %s37, 1
      %p168 = por %p166, %p167
      %p169 = scmp.ne.s32.totalorder %s160, %s161
      %p170 = scmp.eq.s32.totalorder %s37, 0
      %p171 = por %p169, %p170
      %p172 = scmp.ne.s32.totalorder %s160, %s161
      %p173 = scmp.eq.s32.totalorder %s38, 1
      %p174 = por %p172, %p173
      %p176 = scmp.ne.s32.totalorder %s161, %s175
      %p177 = scmp.eq.s32.totalorder %s38, 0
      %p178 = por %p176, %p177
      %s180 = sadd.s32 %s179, 1
      %p183 = scmp.eq.s32.totalorder %s32, 1
      %p184 = scmp.ne.s32.totalorder %s179, %s181
      %p185 = scmp.eq.s32.totalorder %s32, 0
      %p186 = por %p184, %p185
      %p187 = scmp.ne.s32.totalorder %s179, %s181
      %p188 = scmp.eq.s32.totalorder %s37, 1
      %p189 = por %p187, %p188
      %p190 = scmp.ne.s32.totalorder %s181, %s182
      %p191 = scmp.eq.s32.totalorder %s37, 0
      %p192 = por %p190, %p191
      %p193 = scmp.ne.s32.totalorder %s181, %s182
      %p194 = scmp.eq.s32.totalorder %s38, 1
      %p195 = por %p193, %p194
      %p197 = scmp.ne.s32.totalorder %s182, %s196
      %p198 = scmp.eq.s32.totalorder %s38, 0
      %p199 = por %p197, %p198
      %s201 = sadd.s32 %s200, 1
      %p204 = scmp.eq.s32.totalorder %s32, 1
      %p205 = scmp.ne.s32.totalorder %s200, %s202
      %p206 = scmp.eq.s32.totalorder %s32, 0
      %p207 = por %p205, %p206
      %p208 = scmp.ne.s32.totalorder %s200, %s202
      %p209 = scmp.eq.s32.totalorder %s37, 1
      %p210 = por %p208, %p209
      %p211 = scmp.ne.s32.totalorder %s202, %s203
      %p212 = scmp.eq.s32.totalorder %s37, 0
      %p213 = por %p211, %p212
      %p214 = scmp.ne.s32.totalorder %s202, %s203
      %p215 = scmp.eq.s32.totalorder %s38, 1
      %p216 = por %p214, %p215
      %p218 = scmp.ne.s32.totalorder %s203, %s217
      %p219 = scmp.eq.s32.totalorder %s38, 0
      %p220 = por %p218, %p219
      %s222 = sadd.s32 %s221, 1
      %p225 = scmp.eq.s32.totalorder %s32, 1
      %p226 = scmp.ne.s32.totalorder %s221, %s223
      %p227 = scmp.eq.s32.totalorder %s32, 0
      %p228 = por %p226, %p227
      %p229 = scmp.ne.s32.totalorder %s221, %s223
      %p230 = scmp.eq.s32.totalorder %s37, 1
      %p231 = por %p229, %p230
      %p232 = scmp.ne.s32.totalorder %s223, %s224
      %p233 = scmp.eq.s32.totalorder %s37, 0
      %p234 = por %p232, %p233
      %p235 = scmp.ne.s32.totalorder %s223, %s224
      %p236 = scmp.eq.s32.totalorder %s38, 1
      %p237 = por %p235, %p236
      %p239 = scmp.ne.s32.totalorder %s224, %s238
      %p240 = scmp.eq.s32.totalorder %s38, 0
      %p241 = por %p239, %p240
      %s243 = sadd.s32 %s242, 1
      %p246 = scmp.eq.s32.totalorder %s32, 1
      %p247 = scmp.ne.s32.totalorder %s242, %s244
      %p248 = scmp.eq.s32.totalorder %s32, 0
      %p249 = por %p247, %p248
      %p250 = scmp.ne.s32.totalorder %s242, %s244
      %p251 = scmp.eq.s32.totalorder %s37, 1
      %p252 = por %p250, %p251
      %p253 = scmp.ne.s32.totalorder %s244, %s245
      %p254 = scmp.eq.s32.totalorder %s37, 0
      %p255 = por %p253, %p254
      %p256 = scmp.ne.s32.totalorder %s244, %s245
      %p257 = scmp.eq.s32.totalorder %s38, 1
      %p258 = por %p256, %p257
      %p260 = scmp.ne.s32.totalorder %s245, %s259
      %p261 = scmp.eq.s32.totalorder %s38, 0
      %p262 = por %p260, %p261
      %s264 = sadd.s32 %s263, 1
      %p267 = scmp.eq.s32.totalorder %s32, 1
      %p268 = scmp.ne.s32.totalorder %s263, %s265
      %p269 = scmp.eq.s32.totalorder %s32, 0
      %p270 = por %p268, %p269
      %p271 = scmp.ne.s32.totalorder %s263, %s265
      %p272 = scmp.eq.s32.totalorder %s37, 1
      %p273 = por %p271, %p272
      %p274 = scmp.ne.s32.totalorder %s265, %s266
      %p275 = scmp.eq.s32.totalorder %s37, 0
      %p276 = por %p274, %p275
      %p277 = scmp.ne.s32.totalorder %s265, %s266
      %p278 = scmp.eq.s32.totalorder %s38, 1
      %p279 = por %p277, %p278
      %p281 = scmp.ne.s32.totalorder %s266, %s280
      %p282 = scmp.eq.s32.totalorder %s38, 0
      %p283 = por %p281, %p282
      %s285 = sadd.s32 %s284, 1
      %p288 = scmp.eq.s32.totalorder %s32, 1
      %p289 = scmp.ne.s32.totalorder %s284, %s286
      %p290 = scmp.eq.s32.totalorder %s32, 0
      %p291 = por %p289, %p290
      %p292 = scmp.ne.s32.totalorder %s284, %s286
      %p293 = scmp.eq.s32.totalorder %s37, 1
      %p294 = por %p292, %p293
      %p295 = scmp.ne.s32.totalorder %s286, %s287
      %p296 = scmp.eq.s32.totalorder %s37, 0
      %p297 = por %p295, %p296
      %p298 = scmp.ne.s32.totalorder %s286, %s287
      %p299 = scmp.eq.s32.totalorder %s38, 1
      %p300 = por %p298, %p299
      %p302 = scmp.ne.s32.totalorder %s287, %s301
      %p303 = scmp.eq.s32.totalorder %s38, 0
      %p304 = por %p302, %p303
      %s306 = sadd.s32 %s305, 1
      %p309 = scmp.eq.s32.totalorder %s32, 1
      %p310 = scmp.ne.s32.totalorder %s305, %s307
      %p311 = scmp.eq.s32.totalorder %s32, 0
      %p312 = por %p310, %p311
      %p313 = scmp.ne.s32.totalorder %s305, %s307
      %p314 = scmp.eq.s32.totalorder %s37, 1
      %p315 = por %p313, %p314
      %p316 = scmp.ne.s32.totalorder %s307, %s308
      %p317 = scmp.eq.s32.totalorder %s37, 0
      %p318 = por %p316, %p317
      %p319 = scmp.ne.s32.totalorder %s307, %s308
      %p320 = scmp.eq.s32.totalorder %s38, 1
      %p321 = por %p319, %p320
      %p323 = scmp.ne.s32.totalorder %s308, %s322
      %p324 = scmp.eq.s32.totalorder %s38, 0
      %p325 = por %p323, %p324
      %s326 = ssub.s32 %s39, %s51
      %s327 = ssub.s32 %s40, %s47
      %s328 = sor.u32 %s326, %s327
      %p329 = scmp.eq.s32.totalorder %s328, 0
      %s331 = sadd.s32 %s330, 1
      %s332 = scalar_select %p329, %s330, %s331
      %p335 = pneg %p329
      %p336 = scmp.eq.s32.totalorder %s32, 1
      %p337 = por %p335, %p336
      %p338 = scmp.ne.s32.totalorder %s330, %s333
      %p339 = scmp.eq.s32.totalorder %s32, 0
      %p340 = por %p338, %p339
      %p341 = scmp.ne.s32.totalorder %s330, %s333
      %p342 = scmp.eq.s32.totalorder %s37, 1
      %p343 = por %p341, %p342
      %p344 = scmp.ne.s32.totalorder %s333, %s334
      %p345 = scmp.eq.s32.totalorder %s37, 0
      %p346 = por %p344, %p345
      %p347 = scmp.ne.s32.totalorder %s333, %s334
      %p348 = scmp.eq.s32.totalorder %s38, 1
      %p349 = por %p347, %p348
      %p351 = scmp.ne.s32.totalorder %s334, %s350
      %p352 = scmp.eq.s32.totalorder %s38, 0
      %p353 = por %p351, %p352
      %p354 = scmp.le.s32.totalorder 1, %s32
      %p355 = scmp.lt.s32.totalorder %s32, 3
      %p356 = pnand %p354, %p355
      %p357 = pneg %p356
      // Predicated region
      $region9: #{tpu_custom_call.1} parent=5 // pred_check
        _
      $region10: #{tpu_custom_call.1} parent=5 // pred_check_branch
        %359 = sbr.rel (%p356) target = $region12
      $region11: #{tpu_custom_call.1} parent=5 // pred_region
        %s360 = ssub.s32 %s32, 1
        // Predicated region
        $region13: #{tpu_custom_call.1} parent=11 // pred_check
          %p361 = pneg %p124
        $region14: #{tpu_custom_call.1} parent=11 // pred_check_branch
          %363 = sbr.rel (%p361) target = $region16
        $region15: #{tpu_custom_call.1} parent=11 // pred_region
          %s364 = smul.u32 2, %s42
          %s366 = ssub.s32 256, 256
          %367 = vsyncadd [#allocation8], %s366
          %s368 = smul.addr %s364, 128
          %s369 = scalar_lea.hbm %s2, %s368
          %s370 = sshll.u32 [#allocation9], 4
          %s371 = int_to_ptr.vmem [resolvable:$true] %s370
          %376 = dma.hbm_to_vmem [thread:$0]  %s369, 256, %s371, [#allocation8], 128, 128, 8
        $region16: #{tpu_custom_call.1} parent=11 // pred_fallthru
          _
        // Predicated region
        $region17: #{tpu_custom_call.1} parent=11 // pred_check
          %p377 = pneg %p150
        $region18: #{tpu_custom_call.1} parent=11 // pred_check_branch
          %379 = sbr.rel (%p377) target = $region20
        $region19: #{tpu_custom_call.1} parent=11 // pred_region
          %s380 = smul.u32 2, %s42
          %s382 = ssub.s32 256, 256
          %383 = vsyncadd [#allocation11], %s382
          %s384 = smul.addr %s380, 128
          %s385 = scalar_lea.hbm %s3, %s384
          %s386 = sshll.u32 [#allocation10], 4
          %s387 = int_to_ptr.vmem [resolvable:$true] %s386
          %392 = dma.hbm_to_vmem [thread:$0]  %s385, 256, %s387, [#allocation11], 128, 128, 8
        $region20: #{tpu_custom_call.1} parent=11 // pred_fallthru
          _
        // Predicated region
        $region21: #{tpu_custom_call.1} parent=11 // pred_check
          %p393 = pneg %p171
        $region22: #{tpu_custom_call.1} parent=11 // pred_check_branch
          %395 = sbr.rel (%p393) target = $region24
        $region23: #{tpu_custom_call.1} parent=11 // pred_region
          %s397 = ssub.s32 256, 256
          %398 = vsyncadd [#allocation11], %s397
          %s399 = sshll.u32 [#allocation12], 4
          %s400 = int_to_ptr.vmem [resolvable:$true] %s399
          %405 = dma.hbm_to_vmem [thread:$0]  %s4, 256, %s400, [#allocation11], 128, 128, 8
        $region24: #{tpu_custom_call.1} parent=11 // pred_fallthru
          _
        // Predicated region
        $region25: #{tpu_custom_call.1} parent=11 // pred_check
          %p406 = pneg %p192
        $region26: #{tpu_custom_call.1} parent=11 // pred_check_branch
          %408 = sbr.rel (%p406) target = $region28
        $region27: #{tpu_custom_call.1} parent=11 // pred_region
          %s410 = ssub.s32 256, 256
          %411 = vsyncadd [#allocation14], %s410
          %s412 = sshll.u32 [#allocation13], 4
          %s413 = int_to_ptr.vmem [resolvable:$true] %s412
          %418 = dma.hbm_to_vmem [thread:$0]  %s5, 256, %s413, [#allocation14], 128, 128, 8
        $region28: #{tpu_custom_call.1} parent=11 // pred_fallthru
          _
        // Predicated region
        $region29: #{tpu_custom_call.1} parent=11 // pred_check
          %p419 = pneg %p213
        $region30: #{tpu_custom_call.1} parent=11 // pred_check_branch
          %421 = sbr.rel (%p419) target = $region32
        $region31: #{tpu_custom_call.1} parent=11 // pred_region
          %s423 = ssub.s32 256, 256
          %424 = vsyncadd [#allocation14], %s423
          %s425 = sshll.u32 [#allocation15], 4
          %s426 = int_to_ptr.vmem [resolvable:$true] %s425
          %431 = dma.hbm_to_vmem [thread:$0]  %s6, 256, %s426, [#allocation14], 64, 64, 4
        $region32: #{tpu_custom_call.1} parent=11 // pred_fallthru
          _
        // Predicated region
        $region33: #{tpu_custom_call.1} parent=11 // pred_check
          %p432 = pneg %p234
        $region34: #{tpu_custom_call.1} parent=11 // pred_check_branch
          %434 = sbr.rel (%p432) target = $region36
        $region35: #{tpu_custom_call.1} parent=11 // pred_region
          %s436 = ssub.s32 256, 256
          %437 = vsyncadd [#allocation17], %s436
          %s438 = sshll.u32 [#allocation16], 4
          %s439 = int_to_ptr.vmem [resolvable:$true] %s438
          %444 = dma.hbm_to_vmem [thread:$0]  %s7, 256, %s439, [#allocation17], 64, 64, 4
        $region36: #{tpu_custom_call.1} parent=11 // pred_fallthru
          _
        // Predicated region
        $region37: #{tpu_custom_call.1} parent=11 // pred_check
          %p445 = pneg %p255
        $region38: #{tpu_custom_call.1} parent=11 // pred_check_branch
          %447 = sbr.rel (%p445) target = $region40
        $region39: #{tpu_custom_call.1} parent=11 // pred_region
          %s449 = ssub.s32 256, 256
          %450 = vsyncadd [#allocation17], %s449
          %s451 = sshll.u32 [#allocation18], 4
          %s452 = int_to_ptr.vmem [resolvable:$true] %s451
          %457 = dma.hbm_to_vmem [thread:$0]  %s8, 256, %s452, [#allocation17], 64, 64, 4
        $region40: #{tpu_custom_call.1} parent=11 // pred_fallthru
          _
        // Predicated region
        $region41: #{tpu_custom_call.1} parent=11 // pred_check
          %p458 = pneg %p276
        $region42: #{tpu_custom_call.1} parent=11 // pred_check_branch
          %460 = sbr.rel (%p458) target = $region44
        $region43: #{tpu_custom_call.1} parent=11 // pred_region
          %s462 = ssub.s32 256, 256
          %463 = vsyncadd [#allocation20], %s462
          %s464 = sshll.u32 [#allocation19], 4
          %s465 = int_to_ptr.vmem [resolvable:$true] %s464
          %470 = dma.hbm_to_vmem [thread:$0]  %s9, 256, %s465, [#allocation20], 64, 64, 4
        $region44: #{tpu_custom_call.1} parent=11 // pred_fallthru
          _
        // Predicated region
        $region45: #{tpu_custom_call.1} parent=11 // pred_check
          %p471 = pneg %p297
        $region46: #{tpu_custom_call.1} parent=11 // pred_check_branch
          %473 = sbr.rel (%p471) target = $region48
        $region47: #{tpu_custom_call.1} parent=11 // pred_region
          %s475 = ssub.s32 256, 256
          %476 = vsyncadd [#allocation20], %s475
          %s477 = sshll.u32 [#allocation21], 4
          %s478 = int_to_ptr.vmem [resolvable:$true] %s477
          %483 = dma.hbm_to_vmem [thread:$0]  %s10, 256, %s478, [#allocation20], 64, 64, 4
        $region48: #{tpu_custom_call.1} parent=11 // pred_fallthru
          _
        // Predicated region
        $region49: #{tpu_custom_call.1} parent=11 // pred_check
          %p484 = pneg %p318
        $region50: #{tpu_custom_call.1} parent=11 // pred_check_branch
          %486 = sbr.rel (%p484) target = $region52
        $region51: #{tpu_custom_call.1} parent=11 // pred_region
          %s488 = ssub.s32 256, 256
          %489 = vsyncadd [#allocation23], %s488
          %s490 = sshll.u32 [#allocation22], 4
          %s491 = int_to_ptr.vmem [resolvable:$true] %s490
          %496 = dma.hbm_to_vmem [thread:$0]  %s11, 256, %s491, [#allocation23], 64, 64, 4
        $region52: #{tpu_custom_call.1} parent=11 // pred_fallthru
          _
      $region12: #{tpu_custom_call.1} parent=5 // pred_fallthru
        _
      %p497 = scmp.lt.s32.totalorder %s32, 2
      // Predicated region
      $region53: #{tpu_custom_call.1} parent=5 // pred_check
        %p498 = pneg %p497
      $region54: #{tpu_custom_call.1} parent=5 // pred_check_branch
        %500 = sbr.rel (%p498) target = $region56
      $region55: #{tpu_custom_call.1} parent=5 // pred_region
        // Predicated region
        $region57: #{tpu_custom_call.1} parent=55 // pred_check
          %p501 = pneg %p66
        $region58: #{tpu_custom_call.1} parent=55 // pred_check_branch
          %503 = sbr.rel (%p501) target = $region60
        $region59: #{tpu_custom_call.1} parent=55 // pred_region
          %s504 = sand.u32 %s56, 1
          %s505 = scalar_lea.sflag [#allocation5], %s504
          %s506 = sand.u32 %s56, 1
          %s507 = smul.addr %s506, 8
          %s508 = scalar_lea.vmem [#allocation4], %s507
          %s509 = smul.u32 2, %s40
          %s511 = ssub.s32 128, 128
          %512 = vsyncadd %s505, %s511
          %s513 = smul.addr %s39, 2
          %s514 = sadd.s32 %s509, %s513
          %s515 = smul.addr %s514, 64
          %s516 = scalar_lea.hbm %s0, %s515
          %s517 = sshll.u32 %s508, 4
          %s518 = int_to_ptr.vmem [resolvable:$true] %s517
          %523 = dma.hbm_to_vmem [thread:$0]  %s516, 128, %s518, %s505, 64, 64, 4
        $region60: #{tpu_custom_call.1} parent=55 // pred_fallthru
          _
        // Predicated region
        $region61: #{tpu_custom_call.1} parent=55 // pred_check
          %p524 = pneg %p92
        $region62: #{tpu_custom_call.1} parent=55 // pred_check_branch
          %526 = sbr.rel (%p524) target = $region64
        $region63: #{tpu_custom_call.1} parent=55 // pred_region
          %s527 = sand.u32 %s32, 1
          %s528 = scalar_lea.sflag [#allocation8], %s527
          %s529 = sand.u32 %s82, 1
          %s530 = smul.addr %s529, 8
          %s531 = scalar_lea.vmem [#allocation7], %s530
          %s533 = ssub.s32 128, 128
          %534 = vsyncadd %s528, %s533
          %s535 = smul.addr %s39, 2
          %s536 = smul.addr %s535, 64
          %s537 = scalar_lea.hbm %s1, %s536
          %s538 = sshll.u32 %s531, 4
          %s539 = int_to_ptr.vmem [resolvable:$true] %s538
          %544 = dma.hbm_to_vmem [thread:$0]  %s537, 128, %s539, %s528, 64, 64, 4
        $region64: #{tpu_custom_call.1} parent=55 // pred_fallthru
          _
      $region56: #{tpu_custom_call.1} parent=5 // pred_fallthru
        _
      %p545 = scmp.le.s32.totalorder 1, %s32
      %p546 = scmp.lt.s32.totalorder %s32, 3
      %p547 = pnand %p545, %p546
      %p548 = pneg %p547
      // Predicated region
      $region65: #{tpu_custom_call.1} parent=5 // pred_check
        _
      $region66: #{tpu_custom_call.1} parent=5 // pred_check_branch
        %550 = sbr.rel (%p547) target = $region68
      $region67: #{tpu_custom_call.1} parent=5 // pred_region
        %s551 = ssub.s32 %s32, 1
        %s552 = sand.u32 %s59, 1
        %s553 = scalar_lea.sflag [#allocation5], %s552
        %s554 = sand.u32 %s59, 1
        %s555 = smul.addr %s554, 8
        %s556 = scalar_lea.vmem [#allocation4], %s555
        // Predicated region
        $region69: #{tpu_custom_call.1} parent=67 // pred_check
          %p557 = pneg %p72
        $region70: #{tpu_custom_call.1} parent=67 // pred_check_branch
          %559 = sbr.rel (%p557) target = $region72
        $region71: #{tpu_custom_call.1} parent=67 // pred_region
          %560 = dma.done %s553, 128
        $region72: #{tpu_custom_call.1} parent=67 // pred_fallthru
          _
        %s561 = sand.u32 %s37, 1
        %s562 = scalar_lea.sflag [#allocation8], %s561
        %s563 = sand.u32 %s85, 1
        %s564 = smul.addr %s563, 8
        %s565 = scalar_lea.vmem [#allocation7], %s564
        // Predicated region
        $region73: #{tpu_custom_call.1} parent=67 // pred_check
          %p566 = pneg %p98
        $region74: #{tpu_custom_call.1} parent=67 // pred_check_branch
          %568 = sbr.rel (%p566) target = $region76
        $region75: #{tpu_custom_call.1} parent=67 // pred_region
          %569 = dma.done %s562, 128
        $region76: #{tpu_custom_call.1} parent=67 // pred_fallthru
          _
        // Predicated region
        $region77: #{tpu_custom_call.1} parent=67 // pred_check
          %p570 = pneg %p124
        $region78: #{tpu_custom_call.1} parent=67 // pred_check_branch
          %572 = sbr.rel (%p570) target = $region80
        $region79: #{tpu_custom_call.1} parent=67 // pred_region
          %573 = dma.done [#allocation8], 256
        $region80: #{tpu_custom_call.1} parent=67 // pred_fallthru
          _
        // Predicated region
        $region81: #{tpu_custom_call.1} parent=67 // pred_check
          %p574 = pneg %p150
        $region82: #{tpu_custom_call.1} parent=67 // pred_check_branch
          %576 = sbr.rel (%p574) target = $region84
        $region83: #{tpu_custom_call.1} parent=67 // pred_region
          %577 = dma.done [#allocation11], 256
        $region84: #{tpu_custom_call.1} parent=67 // pred_fallthru
          _
        // Predicated region
        $region85: #{tpu_custom_call.1} parent=67 // pred_check
          %p578 = pneg %p171
        $region86: #{tpu_custom_call.1} parent=67 // pred_check_branch
          %580 = sbr.rel (%p578) target = $region88
        $region87: #{tpu_custom_call.1} parent=67 // pred_region
          %581 = dma.done [#allocation11], 256
        $region88: #{tpu_custom_call.1} parent=67 // pred_fallthru
          _
        // Predicated region
        $region89: #{tpu_custom_call.1} parent=67 // pred_check
          %p582 = pneg %p192
        $region90: #{tpu_custom_call.1} parent=67 // pred_check_branch
          %584 = sbr.rel (%p582) target = $region92
        $region91: #{tpu_custom_call.1} parent=67 // pred_region
          %585 = dma.done [#allocation14], 256
        $region92: #{tpu_custom_call.1} parent=67 // pred_fallthru
          _
        // Predicated region
        $region93: #{tpu_custom_call.1} parent=67 // pred_check
          %p586 = pneg %p213
        $region94: #{tpu_custom_call.1} parent=67 // pred_check_branch
          %588 = sbr.rel (%p586) target = $region96
        $region95: #{tpu_custom_call.1} parent=67 // pred_region
          %589 = dma.done [#allocation14], 256
        $region96: #{tpu_custom_call.1} parent=67 // pred_fallthru
          _
        // Predicated region
        $region97: #{tpu_custom_call.1} parent=67 // pred_check
          %p590 = pneg %p234
        $region98: #{tpu_custom_call.1} parent=67 // pred_check_branch
          %592 = sbr.rel (%p590) target = $region100
        $region99: #{tpu_custom_call.1} parent=67 // pred_region
          %593 = dma.done [#allocation17], 256
        $region100: #{tpu_custom_call.1} parent=67 // pred_fallthru
          _
        // Predicated region
        $region101: #{tpu_custom_call.1} parent=67 // pred_check
          %p594 = pneg %p255
        $region102: #{tpu_custom_call.1} parent=67 // pred_check_branch
          %596 = sbr.rel (%p594) target = $region104
        $region103: #{tpu_custom_call.1} parent=67 // pred_region
          %597 = dma.done [#allocation17], 256
        $region104: #{tpu_custom_call.1} parent=67 // pred_fallthru
          _
        // Predicated region
        $region105: #{tpu_custom_call.1} parent=67 // pred_check
          %p598 = pneg %p276
        $region106: #{tpu_custom_call.1} parent=67 // pred_check_branch
          %600 = sbr.rel (%p598) target = $region108
        $region107: #{tpu_custom_call.1} parent=67 // pred_region
          %601 = dma.done [#allocation20], 256
        $region108: #{tpu_custom_call.1} parent=67 // pred_fallthru
          _
        // Predicated region
        $region109: #{tpu_custom_call.1} parent=67 // pred_check
          %p602 = pneg %p297
        $region110: #{tpu_custom_call.1} parent=67 // pred_check_branch
          %604 = sbr.rel (%p602) target = $region112
        $region111: #{tpu_custom_call.1} parent=67 // pred_region
          %605 = dma.done [#allocation20], 256
        $region112: #{tpu_custom_call.1} parent=67 // pred_fallthru
          _
        // Predicated region
        $region113: #{tpu_custom_call.1} parent=67 // pred_check
          %p606 = pneg %p318
        $region114: #{tpu_custom_call.1} parent=67 // pred_check_branch
          %608 = sbr.rel (%p606) target = $region116
        $region115: #{tpu_custom_call.1} parent=67 // pred_region
          %609 = dma.done [#allocation23], 256
        $region116: #{tpu_custom_call.1} parent=67 // pred_fallthru
          _
        %s610 = sand.u32 %s59, 1
        %s611 = scalar_lea.sflag [#allocation5], %s610
        %s612 = sand.u32 %s59, 1
        %s613 = smul.addr %s612, 8
        %s614 = scalar_lea.vmem [#allocation4], %s613
        %p615 = pneg %p72
        %p616 = pneg %p69
        %s617 = sand.u32 %s37, 1
        %s618 = scalar_lea.sflag [#allocation8], %s617
        %s619 = sand.u32 %s85, 1
        %s620 = smul.addr %s619, 8
        %s621 = scalar_lea.vmem [#allocation7], %s620
        %p622 = pneg %p98
        %p623 = pneg %p95
        %p624 = pneg %p124
        %p625 = pneg %p121
        %p626 = pneg %p150
        %p627 = pneg %p147
        %p628 = pneg %p171
        %p629 = pneg %p168
        %p630 = pneg %p192
        %p631 = pneg %p189
        %p632 = pneg %p213
        %p633 = pneg %p210
        %p634 = pneg %p234
        %p635 = pneg %p231
        %p636 = pneg %p255
        %p637 = pneg %p252
        %p638 = pneg %p276
        %p639 = pneg %p273
        %p640 = pneg %p297
        %p641 = pneg %p294
        %p642 = pneg %p318
        %p643 = pneg %p315
        %p644 = pneg %p346
        %p645 = pneg %p343
        %s646 = sand.u32 %s333, 1
        %s647 = scalar_lea.sflag [#allocation6], %s646
        %s648 = sand.u32 %s333, 1
        %s649 = smul.addr %s648, 16
        %s650 = scalar_lea.vmem [#allocation24], %s649
        %s651 = smul.u32 2, %s42
        %s652 = smul.u32 2, %s42
        %s653 = smul.u32 2, %s42
        %s654 = smul.u32 2, %s42
        %p656 = scmp.eq.s32.totalorder %s42, 0
        // Predicated region
        $region117: #{tpu_custom_call.1} parent=67 // pred_check
          %p657 = pneg %p656
        $region118: #{tpu_custom_call.1} parent=67 // pred_check_branch
          %659 = sbr.rel (%p657) target = $region120
        $region119: #{tpu_custom_call.1} parent=67 // pred_region
          %v660 = vld [vmem:[%s565] sm:$0xf]
          %v661 = vld [vmem:[%s565 + $0x4] sm:$0xf]
          %v662 = vld [vmem:[#allocation18] sm:$0xf]
          %v663 = vld [vmem:[#allocation18 + $0x4] sm:$0xf]
          %v664 = vld [vmem:[#allocation18 + $0x8] sm:$0xf]
          %v665 = vld [vmem:[#allocation18 + $0xc] sm:$0xf]
          %v668 = vunpack.c.l.b16 %v660
          %v669 = vunpack.c.l.b16 %v661
          %v670 = vpack.c.b16 %v669, %v668
          %v675 = vunpack.c.l.b16 %v662
          %v676 = vunpack.c.l.b16 %v663
          %v677 = vunpack.c.l.b16 %v664
          %v678 = vunpack.c.l.b16 %v665
          %v679 = vpack.c.b16 %v676, %v675
          %v680 = vpack.c.b16 %v678, %v677
          %vm683 = vcmask 261120
          %v685 = vsel %vm683, %v670, 0
          %687 = vmatprep.subr.bf16.mxu0 0
          %688 = vmatpush1.bf16.msra.mxu0 %v679
          %689 = vmatprep.subr.bf16.mxu0 0
          %690 = vmatpush1.bf16.msra.mxu0 %v680
          %691 = vmatprep.subr.bf16.mxu0 0
          %692 = vmatpush1.bf16.msra.mxu0 0
          %693 = vmatprep.subr.bf16.mxu0 0
          %694 = vmatpush1.bf16.msra.mxu0 0
          %695 = vmatprep.subr.bf16.mxu0 0
          %696 = vmatpush1.bf16.msra.mxu0 0
          %697 = vmatprep.subr.bf16.mxu0 0
          %698 = vmatpush1.bf16.msra.mxu0 0
          %699 = vmatprep.subr.bf16.mxu0 0
          %700 = vmatpush1.bf16.msra.mxu0 0
          %701 = vmatprep.subr.bf16.mxu0 0
          %702 = vmatpush1.bf16.msra.mxu0 0
          %703 = vmatprep.subr.bf16.mxu0 0
          %704 = vmatpush1.bf16.msra.mxu0 0
          %705 = vmatprep.subr.bf16.mxu0 0
          %706 = vmatpush1.bf16.msra.mxu0 0
          %707 = vmatprep.subr.bf16.mxu0 0
          %708 = vmatpush1.bf16.msra.mxu0 0
          %709 = vmatprep.subr.bf16.mxu0 0
          %710 = vmatpush1.bf16.msra.mxu0 0
          %711 = vmatprep.subr.bf16.mxu0 0
          %712 = vmatpush1.bf16.msra.mxu0 0
          %713 = vmatprep.subr.bf16.mxu0 0
          %714 = vmatpush1.bf16.msra.mxu0 0
          %715 = vmatprep.subr.bf16.mxu0 0
          %716 = vmatpush1.bf16.msra.mxu0 0
          %717 = vmatprep.subr.bf16.mxu0 0
          %718 = vmatpush1.bf16.msra.mxu0 0
          %719 = vmatprep.mubr.bf16.mxu0 0
          %720 = vmatmul.mubr.bf16.gmra.mrb[0].mxu0 %v685
          %v721 = vpop.f32.mrb[0].mxu0
          %v722 = vadd.f32 0.0, %v721
          %v723 = vpop.f32.mrb[0].mxu0
          %v724 = vpop.f32.mrb[0].mxu0
          %v725 = vadd.f32 0.0, %v724
          %v726 = vpop.f32.mrb[0].mxu0
          %727 = vdwg.mxu0
          %v728 = vld [vmem:[#allocation19] sm:$0xf]
          %v729 = vld [vmem:[#allocation19 + $0x4] sm:$0xf]
          %v730 = vld [vmem:[#allocation19 + $0x8] sm:$0xf]
          %v731 = vld [vmem:[#allocation19 + $0xc] sm:$0xf]
          %v736 = vunpack.c.l.b16 %v728
          %v737 = vunpack.c.l.b16 %v729
          %v738 = vunpack.c.l.b16 %v730
          %v739 = vunpack.c.l.b16 %v731
          %v740 = vpack.c.b16 %v737, %v736
          %v741 = vpack.c.b16 %v739, %v738
          %744 = vmatprep.subr.bf16.mxu0 0
          %745 = vmatpush1.bf16.msra.mxu0 %v740
          %746 = vmatprep.subr.bf16.mxu0 0
          %747 = vmatpush1.bf16.msra.mxu0 %v741
          %748 = vmatprep.subr.bf16.mxu0 0
          %749 = vmatpush1.bf16.msra.mxu0 0
          %750 = vmatprep.subr.bf16.mxu0 0
          %751 = vmatpush1.bf16.msra.mxu0 0
          %752 = vmatprep.subr.bf16.mxu0 0
          %753 = vmatpush1.bf16.msra.mxu0 0
          %754 = vmatprep.subr.bf16.mxu0 0
          %755 = vmatpush1.bf16.msra.mxu0 0
          %756 = vmatprep.subr.bf16.mxu0 0
          %757 = vmatpush1.bf16.msra.mxu0 0
          %758 = vmatprep.subr.bf16.mxu0 0
          %759 = vmatpush1.bf16.msra.mxu0 0
          %760 = vmatprep.subr.bf16.mxu0 0
          %761 = vmatpush1.bf16.msra.mxu0 0
          %762 = vmatprep.subr.bf16.mxu0 0
          %763 = vmatpush1.bf16.msra.mxu0 0
          %764 = vmatprep.subr.bf16.mxu0 0
          %765 = vmatpush1.bf16.msra.mxu0 0
          %766 = vmatprep.subr.bf16.mxu0 0
          %767 = vmatpush1.bf16.msra.mxu0 0
          %768 = vmatprep.subr.bf16.mxu0 0
          %769 = vmatpush1.bf16.msra.mxu0 0
          %770 = vmatprep.subr.bf16.mxu0 0
          %771 = vmatpush1.bf16.msra.mxu0 0
          %772 = vmatprep.subr.bf16.mxu0 0
          %773 = vmatpush1.bf16.msra.mxu0 0
          %774 = vmatprep.subr.bf16.mxu0 0
          %775 = vmatpush1.bf16.msra.mxu0 0
          %776 = vmatprep.mubr.bf16.mxu0 0
          %777 = vmatmul.mubr.bf16.gmra.mrb[0].mxu0 %v685
          %v778 = vpop.f32.mrb[0].mxu0
          %v779 = vadd.f32 0.0, %v778
          %v780 = vpop.f32.mrb[0].mxu0
          %v781 = vpop.f32.mrb[0].mxu0
          %v782 = vadd.f32 0.0, %v781
          %v783 = vpop.f32.mrb[0].mxu0
          %784 = vdwg.mxu0
          %v785 = vld [vmem:[#allocation21] sm:$0xf]
          %v786 = vld [vmem:[#allocation21 + $0x4] sm:$0xf]
          %v787 = vld [vmem:[#allocation21 + $0x8] sm:$0xf]
          %v788 = vld [vmem:[#allocation21 + $0xc] sm:$0xf]
          %v793 = vunpack.c.l.b16 %v785
          %v794 = vunpack.c.l.b16 %v786
          %v795 = vunpack.c.l.b16 %v787
          %v796 = vunpack.c.l.b16 %v788
          %v797 = vpack.c.b16 %v794, %v793
          %v798 = vpack.c.b16 %v796, %v795
          %801 = vmatprep.subr.bf16.mxu0 0
          %802 = vmatpush1.bf16.msra.mxu0 %v797
          %803 = vmatprep.subr.bf16.mxu0 0
          %804 = vmatpush1.bf16.msra.mxu0 %v798
          %805 = vmatprep.subr.bf16.mxu0 0
          %806 = vmatpush1.bf16.msra.mxu0 0
          %807 = vmatprep.subr.bf16.mxu0 0
          %808 = vmatpush1.bf16.msra.mxu0 0
          %809 = vmatprep.subr.bf16.mxu0 0
          %810 = vmatpush1.bf16.msra.mxu0 0
          %811 = vmatprep.subr.bf16.mxu0 0
          %812 = vmatpush1.bf16.msra.mxu0 0
          %813 = vmatprep.subr.bf16.mxu0 0
          %814 = vmatpush1.bf16.msra.mxu0 0
          %815 = vmatprep.subr.bf16.mxu0 0
          %816 = vmatpush1.bf16.msra.mxu0 0
          %817 = vmatprep.subr.bf16.mxu0 0
          %818 = vmatpush1.bf16.msra.mxu0 0
          %819 = vmatprep.subr.bf16.mxu0 0
          %820 = vmatpush1.bf16.msra.mxu0 0
          %821 = vmatprep.subr.bf16.mxu0 0
          %822 = vmatpush1.bf16.msra.mxu0 0
          %823 = vmatprep.subr.bf16.mxu0 0
          %824 = vmatpush1.bf16.msra.mxu0 0
          %825 = vmatprep.subr.bf16.mxu0 0
          %826 = vmatpush1.bf16.msra.mxu0 0
          %827 = vmatprep.subr.bf16.mxu0 0
          %828 = vmatpush1.bf16.msra.mxu0 0
          %829 = vmatprep.subr.bf16.mxu0 0
          %830 = vmatpush1.bf16.msra.mxu0 0
          %831 = vmatprep.subr.bf16.mxu0 0
          %832 = vmatpush1.bf16.msra.mxu0 0
          %833 = vmatprep.mubr.bf16.mxu0 0
          %834 = vmatmul.mubr.bf16.gmra.mrb[0].mxu0 %v685
          %v835 = vpop.f32.mrb[0].mxu0
          %v836 = vadd.f32 0.0, %v835
          %v837 = vpop.f32.mrb[0].mxu0
          %v838 = vpop.f32.mrb[0].mxu0
          %v839 = vadd.f32 0.0, %v838
          %v840 = vpop.f32.mrb[0].mxu0
          %841 = vdwg.mxu0
          %v842 = vld [vmem:[#allocation12] sm:$0xff]
          %v843 = vld [vmem:[#allocation12 + $0x8] sm:$0xff]
          %v844 = vmul.f32 %v722, %v842
          %v845 = vmul.f32 %v725, %v843
          %v846 = vld [vmem:[#allocation13] sm:$0xff]
          %v847 = vld [vmem:[#allocation13 + $0x8] sm:$0xff]
          %v848 = vmul.f32 %v779, %v846
          %v849 = vmul.f32 %v782, %v847
          %v850 = vadd.f32 %v844, %v848
          %v851 = vadd.f32 %v845, %v849
          %v852 = vpack.c.bf16 %v851, %v850
          %853 = vst.msk [vmem:[#allocation2] sm:$0xff] %vm683, %v852
          %v854 = vpack.c.bf16 %v839, %v836
          %855 = vst.msk [vmem:[#allocation3] sm:$0xff] %vm683, %v854
        $region120: #{tpu_custom_call.1} parent=67 // pred_fallthru
          _
        %v856 = vld [vmem:[%s556] sm:$0xf]
        %v857 = vld [vmem:[%s556 + $0x4] sm:$0xf]
        %v858 = vld [vmem:[#allocation15] sm:$0xf]
        %v859 = vld [vmem:[#allocation15 + $0x4] sm:$0xf]
        %v860 = vld [vmem:[#allocation15 + $0x8] sm:$0xf]
        %v861 = vld [vmem:[#allocation15 + $0xc] sm:$0xf]
        %v864 = vunpack.c.l.b16 %v856
        %v865 = vunpack.c.l.b16 %v857
        %v866 = vpack.c.b16 %v865, %v864
        %v871 = vunpack.c.l.b16 %v858
        %v872 = vunpack.c.l.b16 %v859
        %v873 = vunpack.c.l.b16 %v860
        %v874 = vunpack.c.l.b16 %v861
        %v875 = vpack.c.b16 %v872, %v871
        %v876 = vpack.c.b16 %v874, %v873
        %vm879 = vcmask 261120
        %v881 = vsel %vm879, %v866, 0
        %883 = vmatprep.subr.bf16.mxu0 0
        %884 = vmatpush1.bf16.msra.mxu0 %v875
        %885 = vmatprep.subr.bf16.mxu0 0
        %886 = vmatpush1.bf16.msra.mxu0 %v876
        %887 = vmatprep.subr.bf16.mxu0 0
        %888 = vmatpush1.bf16.msra.mxu0 0
        %889 = vmatprep.subr.bf16.mxu0 0
        %890 = vmatpush1.bf16.msra.mxu0 0
        %891 = vmatprep.subr.bf16.mxu0 0
        %892 = vmatpush1.bf16.msra.mxu0 0
        %893 = vmatprep.subr.bf16.mxu0 0
        %894 = vmatpush1.bf16.msra.mxu0 0
        %895 = vmatprep.subr.bf16.mxu0 0
        %896 = vmatpush1.bf16.msra.mxu0 0
        %897 = vmatprep.subr.bf16.mxu0 0
        %898 = vmatpush1.bf16.msra.mxu0 0
        %899 = vmatprep.subr.bf16.mxu0 0
        %900 = vmatpush1.bf16.msra.mxu0 0
        %901 = vmatprep.subr.bf16.mxu0 0
        %902 = vmatpush1.bf16.msra.mxu0 0
        %903 = vmatprep.subr.bf16.mxu0 0
        %904 = vmatpush1.bf16.msra.mxu0 0
        %905 = vmatprep.subr.bf16.mxu0 0
        %906 = vmatpush1.bf16.msra.mxu0 0
        %907 = vmatprep.subr.bf16.mxu0 0
        %908 = vmatpush1.bf16.msra.mxu0 0
        %909 = vmatprep.subr.bf16.mxu0 0
        %910 = vmatpush1.bf16.msra.mxu0 0
        %911 = vmatprep.subr.bf16.mxu0 0
        %912 = vmatpush1.bf16.msra.mxu0 0
        %913 = vmatprep.subr.bf16.mxu0 0
        %914 = vmatpush1.bf16.msra.mxu0 0
        %915 = vmatprep.mubr.bf16.mxu0 0
        %916 = vmatmul.mubr.bf16.gmra.mrb[0].mxu0 %v881
        %v917 = vpop.f32.mrb[0].mxu0
        %v918 = vadd.f32 0.0, %v917
        %v919 = vpop.f32.mrb[0].mxu0
        %v920 = vpop.f32.mrb[0].mxu0
        %v921 = vadd.f32 0.0, %v920
        %v922 = vpop.f32.mrb[0].mxu0
        %923 = vdwg.mxu0
        %v924 = vld [vmem:[#allocation16] sm:$0xf]
        %v925 = vld [vmem:[#allocation16 + $0x4] sm:$0xf]
        %v926 = vld [vmem:[#allocation16 + $0x8] sm:$0xf]
        %v927 = vld [vmem:[#allocation16 + $0xc] sm:$0xf]
        %v932 = vunpack.c.l.b16 %v924
        %v933 = vunpack.c.l.b16 %v925
        %v934 = vunpack.c.l.b16 %v926
        %v935 = vunpack.c.l.b16 %v927
        %v936 = vpack.c.b16 %v933, %v932
        %v937 = vpack.c.b16 %v935, %v934
        %940 = vmatprep.subr.bf16.mxu0 0
        %941 = vmatpush1.bf16.msra.mxu0 %v936
        %942 = vmatprep.subr.bf16.mxu0 0
        %943 = vmatpush1.bf16.msra.mxu0 %v937
        %944 = vmatprep.subr.bf16.mxu0 0
        %945 = vmatpush1.bf16.msra.mxu0 0
        %946 = vmatprep.subr.bf16.mxu0 0
        %947 = vmatpush1.bf16.msra.mxu0 0
        %948 = vmatprep.subr.bf16.mxu0 0
        %949 = vmatpush1.bf16.msra.mxu0 0
        %950 = vmatprep.subr.bf16.mxu0 0
        %951 = vmatpush1.bf16.msra.mxu0 0
        %952 = vmatprep.subr.bf16.mxu0 0
        %953 = vmatpush1.bf16.msra.mxu0 0
        %954 = vmatprep.subr.bf16.mxu0 0
        %955 = vmatpush1.bf16.msra.mxu0 0
        %956 = vmatprep.subr.bf16.mxu0 0
        %957 = vmatpush1.bf16.msra.mxu0 0
        %958 = vmatprep.subr.bf16.mxu0 0
        %959 = vmatpush1.bf16.msra.mxu0 0
        %960 = vmatprep.subr.bf16.mxu0 0
        %961 = vmatpush1.bf16.msra.mxu0 0
        %962 = vmatprep.subr.bf16.mxu0 0
        %963 = vmatpush1.bf16.msra.mxu0 0
        %964 = vmatprep.subr.bf16.mxu0 0
        %965 = vmatpush1.bf16.msra.mxu0 0
        %966 = vmatprep.subr.bf16.mxu0 0
        %967 = vmatpush1.bf16.msra.mxu0 0
        %968 = vmatprep.subr.bf16.mxu0 0
        %969 = vmatpush1.bf16.msra.mxu0 0
        %970 = vmatprep.subr.bf16.mxu0 0
        %971 = vmatpush1.bf16.msra.mxu0 0
        %972 = vmatprep.mubr.bf16.mxu0 0
        %973 = vmatmul.mubr.bf16.gmra.mrb[0].mxu0 %v881
        %v974 = vpop.f32.mrb[0].mxu0
        %v975 = vadd.f32 0.0, %v974
        %v976 = vpop.f32.mrb[0].mxu0
        %v977 = vpop.f32.mrb[0].mxu0
        %v978 = vadd.f32 0.0, %v977
        %v979 = vpop.f32.mrb[0].mxu0
        %980 = vdwg.mxu0
        %v981 = vld [vmem:[#allocation9] sm:$0xff]
        %v982 = vld [vmem:[#allocation9 + $0x8] sm:$0xff]
        %v983 = vmul.f32 %v918, %v981
        %v984 = vmul.f32 %v921, %v982
        %v985 = vld [vmem:[#allocation10] sm:$0xff]
        %v986 = vld [vmem:[#allocation10 + $0x8] sm:$0xff]
        %v987 = vmul.f32 %v975, %v985
        %v988 = vmul.f32 %v978, %v986
        %v989 = vadd.f32 %v983, %v987
        %v990 = vadd.f32 %v984, %v988
        %v991 = vpack.c.bf16 %v990, %v989
        %v992 = vld [vmem:[#allocation2] sm:$0xff]
        %v993 = vld [vmem:[#allocation3] sm:$0xff]
        %vm994 = vcmask 64512
        %v996 = vsel %vm994, %v991, 0
        %v999 = vsel %vm994, %v992, 0
        %1001 = vmatprep.subr.bf16.mxu0 0
        %1002 = vmatpush1.bf16.xpose.msra.mxu0 %v999
        %1003 = vmatprep.subr.bf16.mxu0 0
        %1004 = vmatpush1.bf16.xpose.msra.mxu0 0
        %1005 = vmatprep.subr.bf16.mxu0 0
        %1006 = vmatpush1.bf16.xpose.msra.mxu0 0
        %1007 = vmatprep.subr.bf16.mxu0 0
        %1008 = vmatpush1.bf16.xpose.msra.mxu0 0
        %1009 = vmatprep.subr.bf16.mxu0 0
        %1010 = vmatpush1.bf16.xpose.msra.mxu0 0
        %1011 = vmatprep.subr.bf16.mxu0 0
        %1012 = vmatpush1.bf16.xpose.msra.mxu0 0
        %1013 = vmatprep.subr.bf16.mxu0 0
        %1014 = vmatpush1.bf16.xpose.msra.mxu0 0
        %1015 = vmatprep.subr.bf16.mxu0 0
        %1016 = vmatpush1.bf16.xpose.msra.mxu0 0
        %1017 = vmatprep.subr.bf16.mxu0 0
        %1018 = vmatpush1.bf16.xpose.msra.mxu0 0
        %1019 = vmatprep.subr.bf16.mxu0 0
        %1020 = vmatpush1.bf16.xpose.msra.mxu0 0
        %1021 = vmatprep.subr.bf16.mxu0 0
        %1022 = vmatpush1.bf16.xpose.msra.mxu0 0
        %1023 = vmatprep.subr.bf16.mxu0 0
        %1024 = vmatpush1.bf16.xpose.msra.mxu0 0
        %1025 = vmatprep.subr.bf16.mxu0 0
        %1026 = vmatpush1.bf16.xpose.msra.mxu0 0
        %1027 = vmatprep.subr.bf16.mxu0 0
        %1028 = vmatpush1.bf16.xpose.msra.mxu0 0
        %1029 = vmatprep.subr.bf16.mxu0 0
        %1030 = vmatpush1.bf16.xpose.msra.mxu0 0
        %1031 = vmatprep.subr.bf16.mxu0 0
        %1032 = vmatpush1.bf16.xpose.msra.mxu0 0
        %1033 = vmatprep.mubr.bf16.mxu0 0
        %1034 = vmatmul.mubr.bf16.gmra.mrb[0].mxu0 %v996
        %v1035 = vpop.f32.mrb[0].mxu0
        %v1036 = vadd.f32 0.0, %v1035
        %v1037 = vpop.f32.mrb[0].mxu0
        %v1038 = vpop.f32.mrb[0].mxu0
        %v1039 = vadd.f32 0.0, %v1038
        %v1040 = vpop.f32.mrb[0].mxu0
        %1041 = vdwg.mxu0
        %vm1042 = vcmask 130048
        %v1043 = vsel %vm1042, %v1036, -inf
        %1044 = vmax.xlane.f32.xlu0 %v1043
        %v1045 = vpop.xlane.xlu0 %1044
        %v1046 = vsel %vm1042, %v1039, -inf
        %1047 = vmax.xlane.f32.xlu0 %v1046
        %v1048 = vpop.xlane.xlu0 %1047
        %v1049 = vsub.f32 %v1036, %v1045
        %v1050 = vsub.f32 %v1039, %v1048
        %v1051 = vmul.f32 %v1049, 1.442695
        %v1052 = vpow.pop %v1051
        %v1053 = vmul.f32 %v1050, 1.442695
        %v1054 = vpow.pop %v1053
        %v1055 = vsel %vm1042, %v1052, 0.0
        %1056 = vadd.xlane.f32.xlu0 %v1055
        %v1057 = vpop.xlane.xlu0 %1056
        %v1058 = vsel %vm1042, %v1054, 0.0
        %1059 = vadd.xlane.f32.xlu0 %v1058
        %v1060 = vpop.xlane.xlu0 %1059
        %v1061 = vrcp.pop %v1057
        %v1062 = vrcp.pop %v1060
        %v1063 = vmul.f32 %v1052, %v1061
        %v1064 = vmul.f32 %v1054, %v1062
        %v1065 = vpack.c.bf16 %v1064, %v1063
        %v1067 = vsel %vm1042, %v1065, 0
        %1069 = vmatprep.subr.bf16.mxu0 0
        %1070 = vmatpush1.bf16.msra.mxu0 %v993
        %1071 = vmatprep.subr.bf16.mxu0 0
        %1072 = vmatpush1.bf16.msra.mxu0 0
        %1073 = vmatprep.subr.bf16.mxu0 0
        %1074 = vmatpush1.bf16.msra.mxu0 0
        %1075 = vmatprep.subr.bf16.mxu0 0
        %1076 = vmatpush1.bf16.msra.mxu0 0
        %1077 = vmatprep.subr.bf16.mxu0 0
        %1078 = vmatpush1.bf16.msra.mxu0 0
        %1079 = vmatprep.subr.bf16.mxu0 0
        %1080 = vmatpush1.bf16.msra.mxu0 0
        %1081 = vmatprep.subr.bf16.mxu0 0
        %1082 = vmatpush1.bf16.msra.mxu0 0
        %1083 = vmatprep.subr.bf16.mxu0 0
        %1084 = vmatpush1.bf16.msra.mxu0 0
        %1085 = vmatprep.subr.bf16.mxu0 0
        %1086 = vmatpush1.bf16.msra.mxu0 0
        %1087 = vmatprep.subr.bf16.mxu0 0
        %1088 = vmatpush1.bf16.msra.mxu0 0
        %1089 = vmatprep.subr.bf16.mxu0 0
        %1090 = vmatpush1.bf16.msra.mxu0 0
        %1091 = vmatprep.subr.bf16.mxu0 0
        %1092 = vmatpush1.bf16.msra.mxu0 0
        %1093 = vmatprep.subr.bf16.mxu0 0
        %1094 = vmatpush1.bf16.msra.mxu0 0
        %1095 = vmatprep.subr.bf16.mxu0 0
        %1096 = vmatpush1.bf16.msra.mxu0 0
        %1097 = vmatprep.subr.bf16.mxu0 0
        %1098 = vmatpush1.bf16.msra.mxu0 0
        %1099 = vmatprep.subr.bf16.mxu0 0
        %1100 = vmatpush1.bf16.msra.mxu0 0
        %1101 = vmatprep.mubr.bf16.mxu0 0
        %1102 = vmatmul.mubr.bf16.gmra.mrb[0].mxu0 %v1067
        %v1103 = vpop.f32.mrb[0].mxu0
        %v1104 = vadd.f32 0.0, %v1103
        %v1105 = vpop.f32.mrb[0].mxu0
        %v1106 = vpop.f32.mrb[0].mxu0
        %v1107 = vadd.f32 0.0, %v1106
        %v1108 = vpop.f32.mrb[0].mxu0
        %1109 = vdwg.mxu0
        %1111 = vrot.lane.b32.xlu0 %v991, 120
        %v1112 = vpop.permute.xlu0 %1111
        %1114 = vrot.lane.b32.xlu0 %v992, 120
        %v1115 = vpop.permute.xlu0 %1114
        %v1117 = vsel %vm994, %v1112, 0
        %v1120 = vsel %vm994, %v1115, 0
        %1122 = vmatprep.subr.bf16.mxu0 0
        %1123 = vmatpush1.bf16.xpose.msra.mxu0 %v1120
        %1124 = vmatprep.subr.bf16.mxu0 0
        %1125 = vmatpush1.bf16.xpose.msra.mxu0 0
        %1126 = vmatprep.subr.bf16.mxu0 0
        %1127 = vmatpush1.bf16.xpose.msra.mxu0 0
        %1128 = vmatprep.subr.bf16.mxu0 0
        %1129 = vmatpush1.bf16.xpose.msra.mxu0 0
        %1130 = vmatprep.subr.bf16.mxu0 0
        %1131 = vmatpush1.bf16.xpose.msra.mxu0 0
        %1132 = vmatprep.subr.bf16.mxu0 0
        %1133 = vmatpush1.bf16.xpose.msra.mxu0 0
        %1134 = vmatprep.subr.bf16.mxu0 0
        %1135 = vmatpush1.bf16.xpose.msra.mxu0 0
        %1136 = vmatprep.subr.bf16.mxu0 0
        %1137 = vmatpush1.bf16.xpose.msra.mxu0 0
        %1138 = vmatprep.subr.bf16.mxu0 0
        %1139 = vmatpush1.bf16.xpose.msra.mxu0 0
        %1140 = vmatprep.subr.bf16.mxu0 0
        %1141 = vmatpush1.bf16.xpose.msra.mxu0 0
        %1142 = vmatprep.subr.bf16.mxu0 0
        %1143 = vmatpush1.bf16.xpose.msra.mxu0 0
        %1144 = vmatprep.subr.bf16.mxu0 0
        %1145 = vmatpush1.bf16.xpose.msra.mxu0 0
        %1146 = vmatprep.subr.bf16.mxu0 0
        %1147 = vmatpush1.bf16.xpose.msra.mxu0 0
        %1148 = vmatprep.subr.bf16.mxu0 0
        %1149 = vmatpush1.bf16.xpose.msra.mxu0 0
        %1150 = vmatprep.subr.bf16.mxu0 0
        %1151 = vmatpush1.bf16.xpose.msra.mxu0 0
        %1152 = vmatprep.subr.bf16.mxu0 0
        %1153 = vmatpush1.bf16.xpose.msra.mxu0 0
        %1154 = vmatprep.mubr.bf16.mxu0 0
        %1155 = vmatmul.mubr.bf16.gmra.mrb[0].mxu0 %v1117
        %v1156 = vpop.f32.mrb[0].mxu0
        %v1157 = vadd.f32 0.0, %v1156
        %v1158 = vpop.f32.mrb[0].mxu0
        %v1159 = vpop.f32.mrb[0].mxu0
        %v1160 = vadd.f32 0.0, %v1159
        %v1161 = vpop.f32.mrb[0].mxu0
        %1162 = vdwg.mxu0
        %v1163 = vsel %vm1042, %v1157, -inf
        %1164 = vmax.xlane.f32.xlu0 %v1163
        %v1165 = vpop.xlane.xlu0 %1164
        %v1166 = vsel %vm1042, %v1160, -inf
        %1167 = vmax.xlane.f32.xlu0 %v1166
        %v1168 = vpop.xlane.xlu0 %1167
        %v1169 = vsub.f32 %v1157, %v1165
        %v1170 = vsub.f32 %v1160, %v1168
        %v1171 = vmul.f32 %v1169, 1.442695
        %v1172 = vpow.pop %v1171
        %v1173 = vmul.f32 %v1170, 1.442695
        %v1174 = vpow.pop %v1173
        %v1175 = vsel %vm1042, %v1172, 0.0
        %1176 = vadd.xlane.f32.xlu0 %v1175
        %v1177 = vpop.xlane.xlu0 %1176
        %v1178 = vsel %vm1042, %v1174, 0.0
        %1179 = vadd.xlane.f32.xlu0 %v1178
        %v1180 = vpop.xlane.xlu0 %1179
        %v1181 = vrcp.pop %v1177
        %v1182 = vrcp.pop %v1180
        %v1183 = vmul.f32 %v1172, %v1181
        %v1184 = vmul.f32 %v1174, %v1182
        %v1185 = vpack.c.bf16 %v1184, %v1183
        %1187 = vrot.lane.b32.xlu0 %v993, 120
        %v1188 = vpop.permute.xlu0 %1187
        %v1191 = vsel %vm1042, %v1185, 0
        %1193 = vmatprep.subr.bf16.mxu0 0
        %1194 = vmatpush1.bf16.msra.mxu0 %v1188
        %1195 = vmatprep.subr.bf16.mxu0 0
        %1196 = vmatpush1.bf16.msra.mxu0 0
        %1197 = vmatprep.subr.bf16.mxu0 0
        %1198 = vmatpush1.bf16.msra.mxu0 0
        %1199 = vmatprep.subr.bf16.mxu0 0
        %1200 = vmatpush1.bf16.msra.mxu0 0
        %1201 = vmatprep.subr.bf16.mxu0 0
        %1202 = vmatpush1.bf16.msra.mxu0 0
        %1203 = vmatprep.subr.bf16.mxu0 0
        %1204 = vmatpush1.bf16.msra.mxu0 0
        %1205 = vmatprep.subr.bf16.mxu0 0
        %1206 = vmatpush1.bf16.msra.mxu0 0
        %1207 = vmatprep.subr.bf16.mxu0 0
        %1208 = vmatpush1.bf16.msra.mxu0 0
        %1209 = vmatprep.subr.bf16.mxu0 0
        %1210 = vmatpush1.bf16.msra.mxu0 0
        %1211 = vmatprep.subr.bf16.mxu0 0
        %1212 = vmatpush1.bf16.msra.mxu0 0
        %1213 = vmatprep.subr.bf16.mxu0 0
        %1214 = vmatpush1.bf16.msra.mxu0 0
        %1215 = vmatprep.subr.bf16.mxu0 0
        %1216 = vmatpush1.bf16.msra.mxu0 0
        %1217 = vmatprep.subr.bf16.mxu0 0
        %1218 = vmatpush1.bf16.msra.mxu0 0
        %1219 = vmatprep.subr.bf16.mxu0 0
        %1220 = vmatpush1.bf16.msra.mxu0 0
        %1221 = vmatprep.subr.bf16.mxu0 0
        %1222 = vmatpush1.bf16.msra.mxu0 0
        %1223 = vmatprep.subr.bf16.mxu0 0
        %1224 = vmatpush1.bf16.msra.mxu0 0
        %1225 = vmatprep.mubr.bf16.mxu0 0
        %1226 = vmatmul.mubr.bf16.gmra.mrb[0].mxu0 %v1191
        %v1227 = vpop.f32.mrb[0].mxu0
        %v1228 = vadd.f32 0.0, %v1227
        %v1229 = vpop.f32.mrb[0].mxu0
        %v1230 = vpop.f32.mrb[0].mxu0
        %v1231 = vadd.f32 0.0, %v1230
        %v1232 = vpop.f32.mrb[0].mxu0
        %1233 = vdwg.mxu0
        %1234 = vrot.lane.b32.xlu0 %v991, 112
        %v1235 = vpop.permute.xlu0 %1234
        %1236 = vrot.lane.b32.xlu0 %v992, 112
        %v1237 = vpop.permute.xlu0 %1236
        %v1239 = vsel %vm994, %v1235, 0
        %v1242 = vsel %vm994, %v1237, 0
        %1244 = vmatprep.subr.bf16.mxu0 0
        %1245 = vmatpush1.bf16.xpose.msra.mxu0 %v1242
        %1246 = vmatprep.subr.bf16.mxu0 0
        %1247 = vmatpush1.bf16.xpose.msra.mxu0 0
        %1248 = vmatprep.subr.bf16.mxu0 0
        %1249 = vmatpush1.bf16.xpose.msra.mxu0 0
        %1250 = vmatprep.subr.bf16.mxu0 0
        %1251 = vmatpush1.bf16.xpose.msra.mxu0 0
        %1252 = vmatprep.subr.bf16.mxu0 0
        %1253 = vmatpush1.bf16.xpose.msra.mxu0 0
        %1254 = vmatprep.subr.bf16.mxu0 0
        %1255 = vmatpush1.bf16.xpose.msra.mxu0 0
        %1256 = vmatprep.subr.bf16.mxu0 0
        %1257 = vmatpush1.bf16.xpose.msra.mxu0 0
        %1258 = vmatprep.subr.bf16.mxu0 0
        %1259 = vmatpush1.bf16.xpose.msra.mxu0 0
        %1260 = vmatprep.subr.bf16.mxu0 0
        %1261 = vmatpush1.bf16.xpose.msra.mxu0 0
        %1262 = vmatprep.subr.bf16.mxu0 0
        %1263 = vmatpush1.bf16.xpose.msra.mxu0 0
        %1264 = vmatprep.subr.bf16.mxu0 0
        %1265 = vmatpush1.bf16.xpose.msra.mxu0 0
        %1266 = vmatprep.subr.bf16.mxu0 0
        %1267 = vmatpush1.bf16.xpose.msra.mxu0 0
        %1268 = vmatprep.subr.bf16.mxu0 0
        %1269 = vmatpush1.bf16.xpose.msra.mxu0 0
        %1270 = vmatprep.subr.bf16.mxu0 0
        %1271 = vmatpush1.bf16.xpose.msra.mxu0 0
        %1272 = vmatprep.subr.bf16.mxu0 0
        %1273 = vmatpush1.bf16.xpose.msra.mxu0 0
        %1274 = vmatprep.subr.bf16.mxu0 0
        %1275 = vmatpush1.bf16.xpose.msra.mxu0 0
        %1276 = vmatprep.mubr.bf16.mxu0 0
        %1277 = vmatmul.mubr.bf16.gmra.mrb[0].mxu0 %v1239
        %v1278 = vpop.f32.mrb[0].mxu0
        %v1279 = vadd.f32 0.0, %v1278
        %v1280 = vpop.f32.mrb[0].mxu0
        %v1281 = vpop.f32.mrb[0].mxu0
        %v1282 = vadd.f32 0.0, %v1281
        %v1283 = vpop.f32.mrb[0].mxu0
        %1284 = vdwg.mxu0
        %v1285 = vsel %vm1042, %v1279, -inf
        %1286 = vmax.xlane.f32.xlu0 %v1285
        %v1287 = vpop.xlane.xlu0 %1286
        %v1288 = vsel %vm1042, %v1282, -inf
        %1289 = vmax.xlane.f32.xlu0 %v1288
        %v1290 = vpop.xlane.xlu0 %1289
        %v1291 = vsub.f32 %v1279, %v1287
        %v1292 = vsub.f32 %v1282, %v1290
        %v1293 = vmul.f32 %v1291, 1.442695
        %v1294 = vpow.pop %v1293
        %v1295 = vmul.f32 %v1292, 1.442695
        %v1296 = vpow.pop %v1295
        %v1297 = vsel %vm1042, %v1294, 0.0
        %1298 = vadd.xlane.f32.xlu0 %v1297
        %v1299 = vpop.xlane.xlu0 %1298
        %v1300 = vsel %vm1042, %v1296, 0.0
        %1301 = vadd.xlane.f32.xlu0 %v1300
        %v1302 = vpop.xlane.xlu0 %1301
        %v1303 = vrcp.pop %v1299
        %v1304 = vrcp.pop %v1302
        %v1305 = vmul.f32 %v1294, %v1303
        %v1306 = vmul.f32 %v1296, %v1304
        %v1307 = vpack.c.bf16 %v1306, %v1305
        %1308 = vrot.lane.b32.xlu0 %v993, 112
        %v1309 = vpop.permute.xlu0 %1308
        %v1312 = vsel %vm1042, %v1307, 0
        %1314 = vmatprep.subr.bf16.mxu0 0
        %1315 = vmatpush1.bf16.msra.mxu0 %v1309
        %1316 = vmatprep.subr.bf16.mxu0 0
        %1317 = vmatpush1.bf16.msra.mxu0 0
        %1318 = vmatprep.subr.bf16.mxu0 0
        %1319 = vmatpush1.bf16.msra.mxu0 0
        %1320 = vmatprep.subr.bf16.mxu0 0
        %1321 = vmatpush1.bf16.msra.mxu0 0
        %1322 = vmatprep.subr.bf16.mxu0 0
        %1323 = vmatpush1.bf16.msra.mxu0 0
        %1324 = vmatprep.subr.bf16.mxu0 0
        %1325 = vmatpush1.bf16.msra.mxu0 0
        %1326 = vmatprep.subr.bf16.mxu0 0
        %1327 = vmatpush1.bf16.msra.mxu0 0
        %1328 = vmatprep.subr.bf16.mxu0 0
        %1329 = vmatpush1.bf16.msra.mxu0 0
        %1330 = vmatprep.subr.bf16.mxu0 0
        %1331 = vmatpush1.bf16.msra.mxu0 0
        %1332 = vmatprep.subr.bf16.mxu0 0
        %1333 = vmatpush1.bf16.msra.mxu0 0
        %1334 = vmatprep.subr.bf16.mxu0 0
        %1335 = vmatpush1.bf16.msra.mxu0 0
        %1336 = vmatprep.subr.bf16.mxu0 0
        %1337 = vmatpush1.bf16.msra.mxu0 0
        %1338 = vmatprep.subr.bf16.mxu0 0
        %1339 = vmatpush1.bf16.msra.mxu0 0
        %1340 = vmatprep.subr.bf16.mxu0 0
        %1341 = vmatpush1.bf16.msra.mxu0 0
        %1342 = vmatprep.subr.bf16.mxu0 0
        %1343 = vmatpush1.bf16.msra.mxu0 0
        %1344 = vmatprep.subr.bf16.mxu0 0
        %1345 = vmatpush1.bf16.msra.mxu0 0
        %1346 = vmatprep.mubr.bf16.mxu0 0
        %1347 = vmatmul.mubr.bf16.gmra.mrb[0].mxu0 %v1312
        %v1348 = vpop.f32.mrb[0].mxu0
        %v1349 = vadd.f32 0.0, %v1348
        %v1350 = vpop.f32.mrb[0].mxu0
        %v1351 = vpop.f32.mrb[0].mxu0
        %v1352 = vadd.f32 0.0, %v1351
        %v1353 = vpop.f32.mrb[0].mxu0
        %1354 = vdwg.mxu0
        %1355 = vrot.lane.b32.xlu0 %v991, 104
        %v1356 = vpop.permute.xlu0 %1355
        %1357 = vrot.lane.b32.xlu0 %v992, 104
        %v1358 = vpop.permute.xlu0 %1357
        %v1360 = vsel %vm994, %v1356, 0
        %v1363 = vsel %vm994, %v1358, 0
        %1365 = vmatprep.subr.bf16.mxu0 0
        %1366 = vmatpush1.bf16.xpose.msra.mxu0 %v1363
        %1367 = vmatprep.subr.bf16.mxu0 0
        %1368 = vmatpush1.bf16.xpose.msra.mxu0 0
        %1369 = vmatprep.subr.bf16.mxu0 0
        %1370 = vmatpush1.bf16.xpose.msra.mxu0 0
        %1371 = vmatprep.subr.bf16.mxu0 0
        %1372 = vmatpush1.bf16.xpose.msra.mxu0 0
        %1373 = vmatprep.subr.bf16.mxu0 0
        %1374 = vmatpush1.bf16.xpose.msra.mxu0 0
        %1375 = vmatprep.subr.bf16.mxu0 0
        %1376 = vmatpush1.bf16.xpose.msra.mxu0 0
        %1377 = vmatprep.subr.bf16.mxu0 0
        %1378 = vmatpush1.bf16.xpose.msra.mxu0 0
        %1379 = vmatprep.subr.bf16.mxu0 0
        %1380 = vmatpush1.bf16.xpose.msra.mxu0 0
        %1381 = vmatprep.subr.bf16.mxu0 0
        %1382 = vmatpush1.bf16.xpose.msra.mxu0 0
        %1383 = vmatprep.subr.bf16.mxu0 0
        %1384 = vmatpush1.bf16.xpose.msra.mxu0 0
        %1385 = vmatprep.subr.bf16.mxu0 0
        %1386 = vmatpush1.bf16.xpose.msra.mxu0 0
        %1387 = vmatprep.subr.bf16.mxu0 0
        %1388 = vmatpush1.bf16.xpose.msra.mxu0 0
        %1389 = vmatprep.subr.bf16.mxu0 0
        %1390 = vmatpush1.bf16.xpose.msra.mxu0 0
        %1391 = vmatprep.subr.bf16.mxu0 0
        %1392 = vmatpush1.bf16.xpose.msra.mxu0 0
        %1393 = vmatprep.subr.bf16.mxu0 0
        %1394 = vmatpush1.bf16.xpose.msra.mxu0 0
        %1395 = vmatprep.subr.bf16.mxu0 0
        %1396 = vmatpush1.bf16.xpose.msra.mxu0 0
        %1397 = vmatprep.mubr.bf16.mxu0 0
        %1398 = vmatmul.mubr.bf16.gmra.mrb[0].mxu0 %v1360
        %v1399 = vpop.f32.mrb[0].mxu0
        %v1400 = vadd.f32 0.0, %v1399
        %v1401 = vpop.f32.mrb[0].mxu0
        %v1402 = vpop.f32.mrb[0].mxu0
        %v1403 = vadd.f32 0.0, %v1402
        %v1404 = vpop.f32.mrb[0].mxu0
        %1405 = vdwg.mxu0
        %v1406 = vsel %vm1042, %v1400, -inf
        %1407 = vmax.xlane.f32.xlu0 %v1406
        %v1408 = vpop.xlane.xlu0 %1407
        %v1409 = vsel %vm1042, %v1403, -inf
        %1410 = vmax.xlane.f32.xlu0 %v1409
        %v1411 = vpop.xlane.xlu0 %1410
        %v1412 = vsub.f32 %v1400, %v1408
        %v1413 = vsub.f32 %v1403, %v1411
        %v1414 = vmul.f32 %v1412, 1.442695
        %v1415 = vpow.pop %v1414
        %v1416 = vmul.f32 %v1413, 1.442695
        %v1417 = vpow.pop %v1416
        %v1418 = vsel %vm1042, %v1415, 0.0
        %1419 = vadd.xlane.f32.xlu0 %v1418
        %v1420 = vpop.xlane.xlu0 %1419
        %v1421 = vsel %vm1042, %v1417, 0.0
        %1422 = vadd.xlane.f32.xlu0 %v1421
        %v1423 = vpop.xlane.xlu0 %1422
        %v1424 = vrcp.pop %v1420
        %v1425 = vrcp.pop %v1423
        %v1426 = vmul.f32 %v1415, %v1424
        %v1427 = vmul.f32 %v1417, %v1425
        %v1428 = vpack.c.bf16 %v1427, %v1426
        %1429 = vrot.lane.b32.xlu0 %v993, 104
        %v1430 = vpop.permute.xlu0 %1429
        %v1433 = vsel %vm1042, %v1428, 0
        %1435 = vmatprep.subr.bf16.mxu0 0
        %1436 = vmatpush1.bf16.msra.mxu0 %v1430
        %1437 = vmatprep.subr.bf16.mxu0 0
        %1438 = vmatpush1.bf16.msra.mxu0 0
        %1439 = vmatprep.subr.bf16.mxu0 0
        %1440 = vmatpush1.bf16.msra.mxu0 0
        %1441 = vmatprep.subr.bf16.mxu0 0
        %1442 = vmatpush1.bf16.msra.mxu0 0
        %1443 = vmatprep.subr.bf16.mxu0 0
        %1444 = vmatpush1.bf16.msra.mxu0 0
        %1445 = vmatprep.subr.bf16.mxu0 0
        %1446 = vmatpush1.bf16.msra.mxu0 0
        %1447 = vmatprep.subr.bf16.mxu0 0
        %1448 = vmatpush1.bf16.msra.mxu0 0
        %1449 = vmatprep.subr.bf16.mxu0 0
        %1450 = vmatpush1.bf16.msra.mxu0 0
        %1451 = vmatprep.subr.bf16.mxu0 0
        %1452 = vmatpush1.bf16.msra.mxu0 0
        %1453 = vmatprep.subr.bf16.mxu0 0
        %1454 = vmatpush1.bf16.msra.mxu0 0
        %1455 = vmatprep.subr.bf16.mxu0 0
        %1456 = vmatpush1.bf16.msra.mxu0 0
        %1457 = vmatprep.subr.bf16.mxu0 0
        %1458 = vmatpush1.bf16.msra.mxu0 0
        %1459 = vmatprep.subr.bf16.mxu0 0
        %1460 = vmatpush1.bf16.msra.mxu0 0
        %1461 = vmatprep.subr.bf16.mxu0 0
        %1462 = vmatpush1.bf16.msra.mxu0 0
        %1463 = vmatprep.subr.bf16.mxu0 0
        %1464 = vmatpush1.bf16.msra.mxu0 0
        %1465 = vmatprep.subr.bf16.mxu0 0
        %1466 = vmatpush1.bf16.msra.mxu0 0
        %1467 = vmatprep.mubr.bf16.mxu0 0
        %1468 = vmatmul.mubr.bf16.gmra.mrb[0].mxu0 %v1433
        %v1469 = vpop.f32.mrb[0].mxu0
        %v1470 = vadd.f32 0.0, %v1469
        %v1471 = vpop.f32.mrb[0].mxu0
        %v1472 = vpop.f32.mrb[0].mxu0
        %v1473 = vadd.f32 0.0, %v1472
        %v1474 = vpop.f32.mrb[0].mxu0
        %1475 = vdwg.mxu0
        %1478 = vrot.lane.b32.xlu0 %v1228, 8
        %v1479 = vpop.permute.xlu0 %1478
        %1480 = vrot.lane.b32.xlu0 %v1231, 8
        %v1481 = vpop.permute.xlu0 %1480
        %1486 = vrot.lane.b32.xlu0 %v1349, 16
        %v1487 = vpop.permute.xlu0 %1486
        %1488 = vrot.lane.b32.xlu0 %v1352, 16
        %v1489 = vpop.permute.xlu0 %1488
        %1494 = vrot.lane.b32.xlu0 %v1470, 24
        %v1495 = vpop.permute.xlu0 %1494
        %1496 = vrot.lane.b32.xlu0 %v1473, 24
        %v1497 = vpop.permute.xlu0 %1496
        %v1500 = vsel %vm994, %v1104, %v1479
        %v1501 = vsel %vm994, %v1107, %v1481
        %v1502 = vsel %vm1042, %v1500, %v1487
        %v1503 = vsel %vm1042, %v1501, %v1489
        %vm1504 = vcmask 195584
        %v1505 = vsel %vm1504, %v1502, %v1495
        %v1506 = vsel %vm1504, %v1503, %v1497
        %v1507 = vpack.c.bf16 %v1506, %v1505
        %v1508 = vld [vmem:[#allocation22] sm:$0xf]
        %v1509 = vld [vmem:[#allocation22 + $0x4] sm:$0xf]
        %v1510 = vld [vmem:[#allocation22 + $0x8] sm:$0xf]
        %v1511 = vld [vmem:[#allocation22 + $0xc] sm:$0xf]
        %v1516 = vunpack.c.l.b16 %v1508
        %v1517 = vunpack.c.l.b16 %v1509
        %v1518 = vunpack.c.l.b16 %v1510
        %v1519 = vunpack.c.l.b16 %v1511
        %v1520 = vpack.c.b16 %v1517, %v1516
        %v1521 = vpack.c.b16 %v1519, %v1518
        %v1525 = vsel %vm879, %v1507, 0
        %1527 = vmatprep.subr.bf16.mxu0 0
        %1528 = vmatpush1.bf16.msra.mxu0 %v1520
        %1529 = vmatprep.subr.bf16.mxu0 0
        %1530 = vmatpush1.bf16.msra.mxu0 %v1521
        %1531 = vmatprep.subr.bf16.mxu0 0
        %1532 = vmatpush1.bf16.msra.mxu0 0
        %1533 = vmatprep.subr.bf16.mxu0 0
        %1534 = vmatpush1.bf16.msra.mxu0 0
        %1535 = vmatprep.subr.bf16.mxu0 0
        %1536 = vmatpush1.bf16.msra.mxu0 0
        %1537 = vmatprep.subr.bf16.mxu0 0
        %1538 = vmatpush1.bf16.msra.mxu0 0
        %1539 = vmatprep.subr.bf16.mxu0 0
        %1540 = vmatpush1.bf16.msra.mxu0 0
        %1541 = vmatprep.subr.bf16.mxu0 0
        %1542 = vmatpush1.bf16.msra.mxu0 0
        %1543 = vmatprep.subr.bf16.mxu0 0
        %1544 = vmatpush1.bf16.msra.mxu0 0
        %1545 = vmatprep.subr.bf16.mxu0 0
        %1546 = vmatpush1.bf16.msra.mxu0 0
        %1547 = vmatprep.subr.bf16.mxu0 0
        %1548 = vmatpush1.bf16.msra.mxu0 0
        %1549 = vmatprep.subr.bf16.mxu0 0
        %1550 = vmatpush1.bf16.msra.mxu0 0
        %1551 = vmatprep.subr.bf16.mxu0 0
        %1552 = vmatpush1.bf16.msra.mxu0 0
        %1553 = vmatprep.subr.bf16.mxu0 0
        %1554 = vmatpush1.bf16.msra.mxu0 0
        %1555 = vmatprep.subr.bf16.mxu0 0
        %1556 = vmatpush1.bf16.msra.mxu0 0
        %1557 = vmatprep.subr.bf16.mxu0 0
        %1558 = vmatpush1.bf16.msra.mxu0 0
        %1559 = vmatprep.mubr.bf16.mxu0 0
        %1560 = vmatmul.mubr.bf16.gmra.mrb[0].mxu0 %v1525
        %v1561 = vpop.f32.mrb[0].mxu0
        %v1562 = vadd.f32 0.0, %v1561
        %v1563 = vpop.f32.mrb[0].mxu0
        %v1564 = vpop.f32.mrb[0].mxu0
        %v1565 = vadd.f32 0.0, %v1564
        %v1566 = vpop.f32.mrb[0].mxu0
        %1567 = vdwg.mxu0
        %1568 = vst.msk [vmem:[%s650] sm:$0xff] %vm879, %v1562
        %1569 = vst.msk [vmem:[%s650 + $0x8] sm:$0xff] %vm879, %v1565
        %s1570 = sand.u32 %s333, 1
        %s1571 = scalar_lea.sflag [#allocation6], %s1570
        %s1572 = sand.u32 %s333, 1
        %s1573 = smul.addr %s1572, 16
        %s1574 = scalar_lea.vmem [#allocation24], %s1573
        // Predicated region
        $region121: #{tpu_custom_call.1} parent=67 // pred_check
          %p1575 = pneg %p343
        $region122: #{tpu_custom_call.1} parent=67 // pred_check_branch
          %1577 = sbr.rel (%p1575) target = $region124
        $region123: #{tpu_custom_call.1} parent=67 // pred_region
          %s1578 = smul.u32 2, %s42
          %s1580 = ssub.s32 256, 256
          %1581 = vsyncadd %s1571, %s1580
          %s1582 = smul.addr %s41, 2
          %s1583 = sadd.s32 %s1578, %s1582
          %s1584 = smul.addr %s1583, 128
          %s1585 = scalar_lea.hbm %s12, %s1584
          %s1586 = sshll.u32 %s1574, 4
          %s1587 = int_to_ptr.vmem [resolvable:$true] %s1586
          %1592 = dma.vmem_to_hbm [thread:$0]  %s1587, 256, %s1585, %s1571, 128, 128, 8
        $region124: #{tpu_custom_call.1} parent=67 // pred_fallthru
          _
      $region68: #{tpu_custom_call.1} parent=5 // pred_fallthru
        _
      %p1593 = scmp.le.s32.totalorder 2, %s32
      // Predicated region
      $region125: #{tpu_custom_call.1} parent=5 // pred_check
        %p1594 = pneg %p1593
      $region126: #{tpu_custom_call.1} parent=5 // pred_check_branch
        %1596 = sbr.rel (%p1594) target = $region128
      $region127: #{tpu_custom_call.1} parent=5 // pred_region
        %s1597 = ssub.s32 %s32, 2
        // Predicated region
        $region129: #{tpu_custom_call.1} parent=127 // pred_check
          %p1598 = pneg %p349
        $region130: #{tpu_custom_call.1} parent=127 // pred_check_branch
          %1600 = sbr.rel (%p1598) target = $region132
        $region131: #{tpu_custom_call.1} parent=127 // pred_region
          %s1601 = sand.u32 %s334, 1
          %s1602 = scalar_lea.sflag [#allocation6], %s1601
          %s1603 = sand.u32 %s334, 1
          %s1604 = smul.addr %s1603, 16
          %s1605 = scalar_lea.vmem [#allocation24], %s1604
          %1606 = dma.done %s1602, 256
        $region132: #{tpu_custom_call.1} parent=127 // pred_fallthru
          _
      $region128: #{tpu_custom_call.1} parent=5 // pred_fallthru
        _
    $region6: #{tpu_custom_call.1} parent=1 // loop_footer
      %s36 = sadd.s32 1, %s32
    $region7: #{tpu_custom_call.1} parent=1 // loop_footer_branch
      %31 = sbr.rel target = $region3
    $region8: #{tpu_custom_call.1} parent=1 // loop_exit
      _
    %1607 = vsyncpa [#allocation5], 1
    %s1608 = scalar_lea.sflag [#allocation5], 1
    %1609 = vsyncpa %s1608, 1
    %1610 = vsyncpa [#allocation8], 1
    %s1611 = scalar_lea.sflag [#allocation8], 1
    %1612 = vsyncpa %s1611, 1
    %1613 = vsyncpa [#allocation11], 1
    %1614 = vsyncpa [#allocation14], 1
    %1615 = vsyncpa [#allocation17], 1
    %1616 = vsyncpa [#allocation20], 1
    %1617 = vsyncpa [#allocation23], 1
    %1618 = vsyncpa [#allocation6], 1
    %s1619 = scalar_lea.sflag [#allocation6], 1
    %1620 = vsyncpa %s1619, 1

</llo_original>
